<compile_context>
chip_gen: v5e
topology: v5e:2x2
jax: 0.10.0
libtpu: 0.0.40
codegen_flags: <defaults>
</compile_context>

<pallas_src>
import math
import functools

import jax
import jax.numpy as jnp
from jax.experimental import pallas as pl
from jax.experimental.pallas import tpu as pltpu

MAX_TILE_M = 2048            # row-tile upper bound
VMEM_TILE_BUDGET = 16 << 20  # double-buffered x + out tiles budget (bytes)
VMEM_LIMIT_BYTES = 32 << 20  # scoped VMEM limit (<= physical on all gens)


def _round_up(x, m):
    return ((x + m - 1) // m) * m


def _gelu_f32(x):
    # exact (erf-based) GELU in f32, matching torch.nn.GELU()
    return 0.5 * x * (1.0 + jax.lax.erf(x * (1.0 / math.sqrt(2.0))))


# ----------------------------------------------------------------------------
# Pallas kernel: fused  (rows, K)bf16 @ (K, N)bf16 -> f32 acc + bias [+ GELU]
# (conv lowered to im2col-matmul; BatchNorm affine pre-folded into W / bias)
# ----------------------------------------------------------------------------
def _matmul_bias_act_kernel(x_ref, w_ref, b_ref, o_ref, *, act):
    acc = jnp.dot(x_ref[...], w_ref[...], preferred_element_type=jnp.float32)
    acc = acc + b_ref[...]                 # f32 epilogue
    if act == "gelu":
        acc = _gelu_f32(acc)
    o_ref[...] = acc.astype(o_ref.dtype)


def _pick_tile_m(rows, k, n, x_bytes, out_bytes):
    """Largest multiple-of-8 divisor of rows that fits VMEM and (when possible)
    yields >= 2 grid steps. Returns (tile_m, rows_padded)."""
    vmem_cap = max(8, VMEM_TILE_BUDGET // (2 * (k * x_bytes + n * out_bytes)))
    cap = min(MAX_TILE_M, vmem_cap, rows)
    if rows >= 16:
        # aim for at least two grid steps (v7x megacore sharding + pipelining)
        cap = min(cap, max(8, (rows // 2) // 8 * 8))
    best = 0
    for t in range(8, cap + 1, 8):
        if rows % t == 0:
            best = t
    if best:
        return best, rows                        # exact tiling, no padding
    if rows <= min(MAX_TILE_M, vmem_cap):
        return rows, rows                        # single full-extent block
    tile = max(8, (cap // 8) * 8)                # rare fallback: pad the tail
    return tile, _round_up(rows, tile)


def matmul_bias_act(x, w, b, act="none", out_dtype=jnp.float32):
    """x: (rows, K) bf16, w: (K, N) bf16, b: (N,) f32 -> (rows, N) out_dtype."""
    rows, k = x.shape
    n = w.shape[1]
    out_bytes = jnp.dtype(out_dtype).itemsize
    tile_m, rows_p = _pick_tile_m(rows, k, n, x.dtype.itemsize, out_bytes)
    xr = x if rows_p == rows else jnp.pad(x, ((0, rows_p - rows), (0, 0)))

    cost = pl.CostEstimate(
        flops=2 * rows_p * k * n,
        transcendentals=rows_p * n if act == "gelu" else 0,
        bytes_accessed=(rows_p * k * x.dtype.itemsize
                        + k * n * w.dtype.itemsize
                        + n * 4
                        + rows_p * n * out_bytes),
    )

    out = pl.pallas_call(
        functools.partial(_matmul_bias_act_kernel, act=act),
        out_shape=jax.ShapeDtypeStruct((rows_p, n), out_dtype),
        grid=(rows_p // tile_m,),
        in_specs=[
            pl.BlockSpec((tile_m, k), lambda i: (i, 0)),
            pl.BlockSpec((k, n), lambda i: (0, 0)),
            pl.BlockSpec((1, n), lambda i: (0, 0)),
        ],
        out_specs=pl.BlockSpec((tile_m, n), lambda i: (i, 0)),
        compiler_params=pltpu.CompilerParams(
            dimension_semantics=("parallel",),
            vmem_limit_bytes=VMEM_LIMIT_BYTES),
        cost_estimate=cost,
    )(xr, w, b.reshape(1, n))
    return out if rows_p == rows else out[:rows]


# ----------------------------------------------------------------------------
# Wrapper-side layout plumbing: stride-2 3x3x3 im2col (padding=1)
# ----------------------------------------------------------------------------
def _im2col_s2_k3(x):
    """x: (B, D, H, W, C) channel-last -> ((B*Do*Ho*Wo, 27*C), (B, Do, Ho, Wo)).
    Patch layout: (kd, kh, kw) outer, channel innermost — matches the folded
    weight layout below."""
    B, D, H, W, C = x.shape
    Do, Ho, Wo = (D + 1) // 2, (H + 1) // 2, (W + 1) // 2
    xp = jnp.pad(x, ((0, 0), (1, 1), (1, 1), (1, 1), (0, 0)))
    taps = []
    for kd in range(3):
        for kh in range(3):
            for kw in range(3):
                taps.append(
                    xp[:, kd:kd + 2 * Do - 1:2,
                          kh:kh + 2 * Ho - 1:2,
                          kw:kw + 2 * Wo - 1:2, :])
    col = jnp.concatenate(taps, axis=-1)
    return col.reshape(B * Do * Ho * Wo, 27 * C), (B, Do, Ho, Wo)


# ----------------------------------------------------------------------------
# Parameter preparation: fold eval-mode BN into conv weights (bf16 operands)
# ----------------------------------------------------------------------------
def _fold_conv_bn(w_conv, bn, eps=1e-5):
    """w_conv: (Cout, Cin, 3, 3, 3) (torch layout), bias-free conv.
    Returns ((27*Cin, Cout) bf16, (Cout,) f32)."""
    co, ci = w_conv.shape[0], w_conv.shape[1]
    w_mat = jnp.transpose(w_conv, (2, 3, 4, 1, 0)).reshape(27 * ci, co)
    scale = bn["weight"] * jax.lax.rsqrt(bn["var"] + eps)
    shift = bn["bias"] - bn["mean"] * scale
    w_fold = (w_mat * scale[None, :]).astype(jnp.bfloat16)   # bf16 MXU operand
    b_fold = shift.astype(jnp.float32)                        # f32 epilogue
    return w_fold, b_fold


def init_raw_params(key, in_ch, out_ch):
    c_mid = out_ch // 2
    ks = jax.random.split(key, 4)

    def conv_w(k, co, ci):
        bound = 1.0 / math.sqrt(ci * 27)        # kaiming-uniform style fan_in
        return jax.random.uniform(k, (co, ci, 3, 3, 3), jnp.float32,
                                  -bound, bound)

    def bn_params(k, c):
        k1, k2, k3, k4 = jax.random.split(k, 4)
        return {
            "weight": 1.0 + 0.05 * jax.random.normal(k1, (c,), jnp.float32),
            "bias": 0.02 * jax.random.normal(k2, (c,), jnp.float32),
            "mean": 0.02 * jax.random.normal(k3, (c,), jnp.float32),
            "var": 1.0 + jnp.abs(0.05 * jax.random.normal(k4, (c,), jnp.float32)),
        }

    return {
        "conv1_w": conv_w(ks[0], c_mid, in_ch),
        "bn1": bn_params(ks[1], c_mid),
        "conv2_w": conv_w(ks[2], out_ch, c_mid),
        "bn2": bn_params(ks[3], out_ch),
    }


def prepare_params(raw):
    w1, b1 = _fold_conv_bn(raw["conv1_w"], raw["bn1"])
    w2, b2 = _fold_conv_bn(raw["conv2_w"], raw["bn2"])
    return {"w1": w1, "b1": b1, "w2": w2, "b2": b2}


# ----------------------------------------------------------------------------
# head_embedding forward
# ----------------------------------------------------------------------------
def head_embedding_forward(params, x_ncdhw, *, c_mid, c_out):
    x = jnp.transpose(x_ncdhw, (0, 2, 3, 4, 1))             # NCDHW -> NDHWC
    x = x.astype(jnp.bfloat16)                               # bf16 MXU operand

    # Conv3d(Cin, Cmid, 3, s=2, p=1) + BN(folded) + GELU  — one fused kernel
    col1, (B, D1, H1, W1) = _im2col_s2_k3(x)
    y = matmul_bias_act(col1, params["w1"], params["b1"],
                        act="gelu", out_dtype=jnp.bfloat16)
    y = y.reshape(B, D1, H1, W1, c_mid)

    # Conv3d(Cmid, Cout, 3, s=2, p=1) + BN(folded)        — one fused kernel
    col2, (B, D2, H2, W2) = _im2col_s2_k3(y)
    z = matmul_bias_act(col2, params["w2"], params["b2"],
                        act="none", out_dtype=jnp.float32)
    z = z.reshape(B, D2, H2, W2, c_out)

    return jnp.transpose(z, (0, 4, 1, 2, 3))                # NDHWC -> NCDHW


# ----------------------------------------------------------------------------
if __name__ == "__main__":
    IN_CH, OUT_CH = 3, 16
    B, D, H, W = 2, 8, 16, 16                               # small NCDHW input

    key = jax.random.PRNGKey(0)
    kp, kx = jax.random.split(key)
    params = prepare_params(init_raw_params(kp, IN_CH, OUT_CH))

    x = jax.random.normal(kx, (B, IN_CH, D, H, W), dtype=jnp.float32)

    fwd = jax.jit(functools.partial(head_embedding_forward,
                                    c_mid=OUT_CH // 2, c_out=OUT_CH))
    y = jax.block_until_ready(fwd(params, x))

    assert y.shape == (B, OUT_CH, D // 4, H // 4, W // 4), y.shape
    assert y.dtype == jnp.float32
    assert bool(jnp.all(jnp.isfinite(y)))
    print("KERNEL_OK")
</pallas_src>

<mosaic_0001>
module attributes {stable_mosaic.version = 11 : i64} {
  func.func @_matmul_bias_act_kernel(%arg0: i32, %arg1: memref<256x81xbf16, #tpu.memory_space<vmem>>, %arg2: memref<81x8xbf16, #tpu.memory_space<vmem>>, %arg3: memref<1x8xf32, #tpu.memory_space<vmem>>, %arg4: memref<256x8xbf16, #tpu.memory_space<vmem>>) attributes {dimension_semantics = [#tpu.dimension_semantics<parallel>], iteration_bounds = array<i64: 2>, scalar_prefetch = 0 : i64, scratch_operands = 0 : i64, tpu.core_type = #tpu.core_type<tc>, window_params = [{transform_indices = @transform_0, window_bounds = array<i64: 256, 81>}, {pipeline_mode = #tpu.pipeline_mode<synchronous>, transform_indices = @transform_1, window_bounds = array<i64: 81, 8>}, {pipeline_mode = #tpu.pipeline_mode<synchronous>, transform_indices = @transform_2, window_bounds = array<i64: 1, 8>}, {transform_indices = @transform_3, window_bounds = array<i64: 256, 8>}]} {
    %c0 = arith.constant 0 : index
    %c0_0 = arith.constant 0 : index
    %0 = vector.load %arg1[%c0, %c0_0] : memref<256x81xbf16, #tpu.memory_space<vmem>>, vector<256x81xbf16>
    %c0_1 = arith.constant 0 : index
    %c0_2 = arith.constant 0 : index
    %1 = vector.load %arg2[%c0_1, %c0_2] : memref<81x8xbf16, #tpu.memory_space<vmem>>, vector<81x8xbf16>
    %cst = arith.constant dense<0.000000e+00> : vector<256x8xf32>
    %2 = tpu.matmul %0, %1, %cst {dimension_numbers = #tpu.dot_dimension_numbers<[1], [0], [0], [1], [0, 0, 1, 1], [], []>} : vector<256x81xbf16>, vector<81x8xbf16>, vector<256x8xf32> -> vector<256x8xf32>
    %c0_3 = arith.constant 0 : index
    %c0_4 = arith.constant 0 : index
    %3 = vector.load %arg3[%c0_3, %c0_4] : memref<1x8xf32, #tpu.memory_space<vmem>>, vector<1x8xf32>
    %4 = vector.broadcast %3 : vector<1x8xf32> to vector<256x8xf32>
    %5 = arith.addf %2, %4 : vector<256x8xf32>
    %cst_5 = arith.constant 5.000000e-01 : f32
    %6 = vector.broadcast %cst_5 : f32 to vector<256x8xf32>
    %7 = arith.mulf %6, %5 : vector<256x8xf32>
    %cst_6 = arith.constant 0.707106769 : f32
    %8 = vector.broadcast %cst_6 : f32 to vector<256x8xf32>
    %9 = arith.mulf %5, %8 : vector<256x8xf32>
    %10 = math.erf %9 : vector<256x8xf32>
    %cst_7 = arith.constant 1.000000e+00 : f32
    %11 = vector.broadcast %cst_7 : f32 to vector<256x8xf32>
    %12 = arith.addf %11, %10 : vector<256x8xf32>
    %13 = arith.mulf %7, %12 : vector<256x8xf32>
    %14 = arith.truncf %13 : vector<256x8xf32> to vector<256x8xbf16>
    %c0_8 = arith.constant 0 : index
    %c0_9 = arith.constant 0 : index
    %15 = vector.load %arg4[%c0_8, %c0_9] : memref<256x8xbf16, #tpu.memory_space<vmem>>, vector<256x8xbf16>
    tpu.vector_store %arg4[%c0_8, %c0_9], %14 {strides = array<i32>} : memref<256x8xbf16, #tpu.memory_space<vmem>>, vector<256x8xbf16>,
    return
  }
  func.func @transform_0(%arg0: i32) -> (i32, i32) {
    %c0_i32 = arith.constant 0 : i32
    %c0_i32_0 = arith.constant 0 : i32
    return %arg0, %c0_i32 : i32, i32
  }
  func.func @transform_1(%arg0: i32) -> (i32, i32) {
    %c0_i32 = arith.constant 0 : i32
    %c0_i32_0 = arith.constant 0 : i32
    %c0_i32_1 = arith.constant 0 : i32
    return %c0_i32, %c0_i32_0 : i32, i32
  }
  func.func @transform_2(%arg0: i32) -> (i32, i32) {
    %c0_i32 = arith.constant 0 : i32
    %c0_i32_0 = arith.constant 0 : i32
    %c0_i32_1 = arith.constant 0 : i32
    return %c0_i32, %c0_i32_0 : i32, i32
  }
  func.func @transform_3(%arg0: i32) -> (i32, i32) {
    %c0_i32 = arith.constant 0 : i32
    %c0_i32_0 = arith.constant 0 : i32
    return %arg0, %c0_i32 : i32, i32
  }
}

module attributes {stable_mosaic.version = 11 : i64} {
  func.func @_matmul_bias_act_kernel(%arg0: i32, %arg1: memref<32x216xbf16, #tpu.memory_space<vmem>>, %arg2: memref<216x16xbf16, #tpu.memory_space<vmem>>, %arg3: memref<1x16xf32, #tpu.memory_space<vmem>>, %arg4: memref<32x16xf32, #tpu.memory_space<vmem>>) attributes {dimension_semantics = [#tpu.dimension_semantics<parallel>], iteration_bounds = array<i64: 2>, scalar_prefetch = 0 : i64, scratch_operands = 0 : i64, tpu.core_type = #tpu.core_type<tc>, window_params = [{transform_indices = @transform_0, window_bounds = array<i64: 32, 216>}, {pipeline_mode = #tpu.pipeline_mode<synchronous>, transform_indices = @transform_1, window_bounds = array<i64: 216, 16>}, {pipeline_mode = #tpu.pipeline_mode<synchronous>, transform_indices = @transform_2, window_bounds = array<i64: 1, 16>}, {transform_indices = @transform_3, window_bounds = array<i64: 32, 16>}]} {
    %c0 = arith.constant 0 : index
    %c0_0 = arith.constant 0 : index
    %0 = vector.load %arg1[%c0, %c0_0] : memref<32x216xbf16, #tpu.memory_space<vmem>>, vector<32x216xbf16>
    %c0_1 = arith.constant 0 : index
    %c0_2 = arith.constant 0 : index
    %1 = vector.load %arg2[%c0_1, %c0_2] : memref<216x16xbf16, #tpu.memory_space<vmem>>, vector<216x16xbf16>
    %cst = arith.constant dense<0.000000e+00> : vector<32x16xf32>
    %2 = tpu.matmul %0, %1, %cst {dimension_numbers = #tpu.dot_dimension_numbers<[1], [0], [0], [1], [0, 0, 1, 1], [], []>} : vector<32x216xbf16>, vector<216x16xbf16>, vector<32x16xf32> -> vector<32x16xf32>
    %c0_3 = arith.constant 0 : index
    %c0_4 = arith.constant 0 : index
    %3 = vector.load %arg3[%c0_3, %c0_4] : memref<1x16xf32, #tpu.memory_space<vmem>>, vector<1x16xf32>
    %4 = vector.broadcast %3 : vector<1x16xf32> to vector<32x16xf32>
    %5 = arith.addf %2, %4 : vector<32x16xf32>
    %c0_5 = arith.constant 0 : index
    %c0_6 = arith.constant 0 : index
    %6 = vector.load %arg4[%c0_5, %c0_6] : memref<32x16xf32, #tpu.memory_space<vmem>>, vector<32x16xf32>
    tpu.vector_store %arg4[%c0_5, %c0_6], %5 {strides = array<i32>} : memref<32x16xf32, #tpu.memory_space<vmem>>, vector<32x16xf32>,
    return
  }
  func.func @transform_0(%arg0: i32) -> (i32, i32) {
    %c0_i32 = arith.constant 0 : i32
    %c0_i32_0 = arith.constant 0 : i32
    return %arg0, %c0_i32 : i32, i32
  }
  func.func @transform_1(%arg0: i32) -> (i32, i32) {
    %c0_i32 = arith.constant 0 : i32
    %c0_i32_0 = arith.constant 0 : i32
    %c0_i32_1 = arith.constant 0 : i32
    return %c0_i32, %c0_i32_0 : i32, i32
  }
  func.func @transform_2(%arg0: i32) -> (i32, i32) {
    %c0_i32 = arith.constant 0 : i32
    %c0_i32_0 = arith.constant 0 : i32
    %c0_i32_1 = arith.constant 0 : i32
    return %c0_i32, %c0_i32_0 : i32, i32
  }
  func.func @transform_3(%arg0: i32) -> (i32, i32) {
    %c0_i32 = arith.constant 0 : i32
    %c0_i32_0 = arith.constant 0 : i32
    return %arg0, %c0_i32 : i32, i32
  }
}

</mosaic_0001>

<llo_original>
// kernel: head_embedding_forward.2
$region0: #{head_embedding_forward.2}
  #allocation0 [shape = 'u32[]', space=smem, size = 0x4, offset = 0x4, fixed_abs, tag = 'smem constant byte address 0x4 - core index']
  #allocation1 [shape = 'u32[72,128]{1,0:T(1,128)}', space=vmem, size = 0x9000, scoped, tag = 'internal scratch']
  %s0 = inlined_call_operand.vmem [shape: bf16[512,81], index: 0, kind: input, shape index: {}]
  %s1 = inlined_call_operand.vmem [shape: bf16[81,8], index: 1, kind: input, shape index: {}]
  %s2 = inlined_call_operand.vmem [shape: f32[1,8], index: 2, kind: input, shape index: {}]
  %s3 = inlined_call_operand.vmem [shape: bf16[512,8], index: 3, kind: output, shape index: {}]
  %s4 = sld [smem:[#allocation0]]
  $region45: #{head_embedding_forward.2} parent=0
    _
  %s6 = ssub.s32 1, %s4
  %s7 = scalar_select 0, %s6, %s4
  loop: start=0, step=1, limit=4
  $region2: #{head_embedding_forward.2} parent=0 // loop_pre_header
    _
  $region3: #{head_embedding_forward.2} parent=0 // loop_header
    %s9 = sphi 0, %s13
    %p10 = scmp.ge.s32.totalorder %s9, 4
    %s19 = sphi 0, %s21
    %s22 = sphi 0, %s19
    %s23 = sphi 0, %s22
    %s39 = sphi 0, %s23
    %s43 = sphi 0, %s43
    %s45 = sphi 0, %s43
    %s46 = sphi 0, %s45
    %s60 = sphi 0, %s46
    %s64 = sphi 0, %s64
    %s66 = sphi 0, %s64
    %s67 = sphi 0, %s66
    %s81 = sphi 0, %s67
    %s87 = sphi 0, %s89
    %s90 = sphi 0, %s87
    %s91 = sphi 0, %s90
    %s107 = sphi 0, %s91
  $region4: #{head_embedding_forward.2} parent=0 // loop_header_branch
    %12 = sbr.rel (%p10) target = $region8
  $region5: #{head_embedding_forward.2} parent=0 // loop_body
    %s14 = ssub.s32 %s9, 1
    %s15 = ssub.s32 %s9, 2
    %s16 = sadd.s32 %s9, 1
    %s17 = ssub.s32 %s9, %s16
    %p18 = scmp.eq.s32.totalorder %s17, 0
    %s20 = sadd.s32 %s19, 1
    %s21 = scalar_select %p18, %s19, %s20
    %p24 = pneg %p18
    %p25 = scmp.eq.s32.totalorder %s9, 1
    %p26 = por %p24, %p25
    %p27 = scmp.ne.s32.totalorder %s19, %s22
    %p28 = scmp.eq.s32.totalorder %s9, 0
    %p29 = por %p27, %p28
    %p30 = scmp.ne.s32.totalorder %s19, %s22
    %p31 = scmp.eq.s32.totalorder %s14, 1
    %p32 = por %p30, %p31
    %p33 = scmp.ne.s32.totalorder %s22, %s23
    %p34 = scmp.eq.s32.totalorder %s14, 0
    %p35 = por %p33, %p34
    %p36 = scmp.ne.s32.totalorder %s22, %s23
    %p37 = scmp.eq.s32.totalorder %s15, 1
    %p38 = por %p36, %p37
    %p40 = scmp.ne.s32.totalorder %s23, %s39
    %p41 = scmp.eq.s32.totalorder %s15, 0
    %p42 = por %p40, %p41
    %s44 = sadd.s32 %s43, 1
    %p47 = scmp.eq.s32.totalorder %s9, 1
    %p48 = scmp.ne.s32.totalorder %s43, %s45
    %p49 = scmp.eq.s32.totalorder %s9, 0
    %p50 = por %p48, %p49
    %p51 = scmp.ne.s32.totalorder %s43, %s45
    %p52 = scmp.eq.s32.totalorder %s14, 1
    %p53 = por %p51, %p52
    %p54 = scmp.ne.s32.totalorder %s45, %s46
    %p55 = scmp.eq.s32.totalorder %s14, 0
    %p56 = por %p54, %p55
    %p57 = scmp.ne.s32.totalorder %s45, %s46
    %p58 = scmp.eq.s32.totalorder %s15, 1
    %p59 = por %p57, %p58
    %p61 = scmp.ne.s32.totalorder %s46, %s60
    %p62 = scmp.eq.s32.totalorder %s15, 0
    %p63 = por %p61, %p62
    %s65 = sadd.s32 %s64, 1
    %p68 = scmp.eq.s32.totalorder %s9, 1
    %p69 = scmp.ne.s32.totalorder %s64, %s66
    %p70 = scmp.eq.s32.totalorder %s9, 0
    %p71 = por %p69, %p70
    %p72 = scmp.ne.s32.totalorder %s64, %s66
    %p73 = scmp.eq.s32.totalorder %s14, 1
    %p74 = por %p72, %p73
    %p75 = scmp.ne.s32.totalorder %s66, %s67
    %p76 = scmp.eq.s32.totalorder %s14, 0
    %p77 = por %p75, %p76
    %p78 = scmp.ne.s32.totalorder %s66, %s67
    %p79 = scmp.eq.s32.totalorder %s15, 1
    %p80 = por %p78, %p79
    %p82 = scmp.ne.s32.totalorder %s67, %s81
    %p83 = scmp.eq.s32.totalorder %s15, 0
    %p84 = por %p82, %p83
    %s85 = ssub.s32 %s9, %s16
    %p86 = scmp.eq.s32.totalorder %s85, 0
    %s88 = sadd.s32 %s87, 1
    %s89 = scalar_select %p86, %s87, %s88
    %p92 = pneg %p86
    %p93 = scmp.eq.s32.totalorder %s9, 1
    %p94 = por %p92, %p93
    %p95 = scmp.ne.s32.totalorder %s87, %s90
    %p96 = scmp.eq.s32.totalorder %s9, 0
    %p97 = por %p95, %p96
    %p98 = scmp.ne.s32.totalorder %s87, %s90
    %p99 = scmp.eq.s32.totalorder %s14, 1
    %p100 = por %p98, %p99
    %p101 = scmp.ne.s32.totalorder %s90, %s91
    %p102 = scmp.eq.s32.totalorder %s14, 0
    %p103 = por %p101, %p102
    %p104 = scmp.ne.s32.totalorder %s90, %s91
    %p105 = scmp.eq.s32.totalorder %s15, 1
    %p106 = por %p104, %p105
    %p108 = scmp.ne.s32.totalorder %s91, %s107
    %p109 = scmp.eq.s32.totalorder %s15, 0
    %p110 = por %p108, %p109
    %p111 = scmp.le.s32.totalorder 1, %s9
    %p112 = scmp.lt.s32.totalorder %s9, 3
    %p113 = pnand %p111, %p112
    %p114 = pneg %p113
    // Predicated region
    $region9: #{head_embedding_forward.2} parent=5 // pred_check
      _
    $region10: #{head_embedding_forward.2} parent=5 // pred_check_branch
      %116 = sbr.rel (%p113) target = $region12
    $region11: #{head_embedding_forward.2} parent=5 // pred_region
      %s117 = ssub.s32 %s9, 1
      // Predicated region
      $region13: #{head_embedding_forward.2} parent=11 // pred_check
        %p118 = pneg %p56
      $region14: #{head_embedding_forward.2} parent=11 // pred_check_branch
        %120 = sbr.rel (%p118) target = $region16
      $region15: #{head_embedding_forward.2} parent=11 // pred_region
        _
      $region16: #{head_embedding_forward.2} parent=11 // pred_fallthru
        _
      // Predicated region
      $region17: #{head_embedding_forward.2} parent=11 // pred_check
        %p121 = pneg %p77
      $region18: #{head_embedding_forward.2} parent=11 // pred_check_branch
        %123 = sbr.rel (%p121) target = $region20
      $region19: #{head_embedding_forward.2} parent=11 // pred_region
        _
      $region20: #{head_embedding_forward.2} parent=11 // pred_fallthru
        _
    $region12: #{head_embedding_forward.2} parent=5 // pred_fallthru
      _
    %p124 = scmp.lt.s32.totalorder %s9, 2
    // Predicated region
    $region21: #{head_embedding_forward.2} parent=5 // pred_check
      %p125 = pneg %p124
    $region22: #{head_embedding_forward.2} parent=5 // pred_check_branch
      %127 = sbr.rel (%p125) target = $region24
    $region23: #{head_embedding_forward.2} parent=5 // pred_region
      // Predicated region
      $region25: #{head_embedding_forward.2} parent=23 // pred_check
        %p128 = pneg %p29
      $region26: #{head_embedding_forward.2} parent=23 // pred_check_branch
        %130 = sbr.rel (%p128) target = $region28
      $region27: #{head_embedding_forward.2} parent=23 // pred_region
        %s131 = smul.u32 32, %s9
        %p132 = scmp.lt.s32.totalorder %s131, 63
        %s133 = scalar_select %p132, %s131, 63
        %s134 = smul.addr %s133, 4
        %s135 = scalar_lea.vmem %s0, %s134
        %s136 = smul.u32 32, %s9
      $region28: #{head_embedding_forward.2} parent=23 // pred_fallthru
        _
    $region24: #{head_embedding_forward.2} parent=5 // pred_fallthru
      _
    %p137 = scmp.le.s32.totalorder 1, %s9
    %p138 = scmp.lt.s32.totalorder %s9, 3
    %p139 = pnand %p137, %p138
    %p140 = pneg %p139
    // Predicated region
    $region29: #{head_embedding_forward.2} parent=5 // pred_check
      _
    $region30: #{head_embedding_forward.2} parent=5 // pred_check_branch
      %142 = sbr.rel (%p139) target = $region32
    $region31: #{head_embedding_forward.2} parent=5 // pred_region
      %s143 = ssub.s32 %s9, 1
      %s144 = smul.u32 32, %s14
      %p145 = scmp.lt.s32.totalorder %s144, 63
      %s146 = scalar_select %p145, %s144, 63
      %s147 = smul.addr %s146, 4
      %s148 = scalar_lea.vmem %s0, %s147
      %p149 = pneg %p35
      %p150 = pneg %p32
      %p151 = pneg %p56
      %p152 = pneg %p53
      %p153 = pneg %p77
      %p154 = pneg %p74
      %p155 = pneg %p103
      %p156 = pneg %p100
      %s157 = smul.u32 32, %s14
      %p158 = scmp.lt.s32.totalorder %s157, 63
      %s159 = scalar_select %p158, %s157, 63
      %s160 = smul.addr %s159, 4
      %s161 = scalar_lea.vmem %s3, %s160
      %s162 = smul.u32 32, %s14
      %p163 = scmp.lt.s32.totalorder %s162, 63
      %s164 = scalar_select %p163, %s162, 63
      %s165 = smul.addr %s164, 4
      %s166 = scalar_lea.vmem %s0, %s165
      %s167 = smul.u32 32, %s14
      %s168 = smul.u32 32, %s14
      %p169 = scmp.lt.s32.totalorder %s168, 63
      %s170 = scalar_select %p169, %s168, 63
      %s171 = smul.addr %s170, 4
      %s172 = scalar_lea.vmem %s3, %s171
      %s173 = smul.u32 32, %s14
      %v175 = vld [vmem:[%s166] sm:$0xf]
      %v176 = vld [vmem:[%s166 + $0x4] sm:$0xf]
      %v177 = vld [vmem:[%s166 + $0x8] sm:$0xf]
      %v178 = vld [vmem:[%s166 + $0xc] sm:$0xf]
      %v179 = vld [vmem:[%s166 + $0x10] sm:$0xf]
      %v180 = vld [vmem:[%s166 + $0x14] sm:$0xf]
      %v181 = vld [vmem:[%s166 + $0x18] sm:$0xf]
      %v182 = vld [vmem:[%s166 + $0x1c] sm:$0xf]
      %v183 = vld [vmem:[%s166 + $0x20] sm:$0xf]
      %v184 = vld [vmem:[%s166 + $0x24] sm:$0xf]
      %v185 = vld [vmem:[%s166 + $0x28] sm:$0xf]
      %v186 = vld [vmem:[%s166 + $0x2c] sm:$0xf]
      %v187 = vld [vmem:[%s166 + $0x30] sm:$0xf]
      %v188 = vld [vmem:[%s166 + $0x34] sm:$0xf]
      %v189 = vld [vmem:[%s166 + $0x38] sm:$0xf]
      %v190 = vld [vmem:[%s166 + $0x3c] sm:$0xf]
      %v191 = vld [vmem:[%s166 + $0x40] sm:$0xf]
      %v192 = vld [vmem:[%s166 + $0x44] sm:$0xf]
      %v193 = vld [vmem:[%s166 + $0x48] sm:$0xf]
      %v194 = vld [vmem:[%s166 + $0x4c] sm:$0xf]
      %v195 = vld [vmem:[%s166 + $0x50] sm:$0xf]
      %v196 = vld [vmem:[%s166 + $0x54] sm:$0xf]
      %v197 = vld [vmem:[%s166 + $0x58] sm:$0xf]
      %v198 = vld [vmem:[%s166 + $0x5c] sm:$0xf]
      %v199 = vld [vmem:[%s166 + $0x60] sm:$0xf]
      %v200 = vld [vmem:[%s166 + $0x64] sm:$0xf]
      %v201 = vld [vmem:[%s166 + $0x68] sm:$0xf]
      %v202 = vld [vmem:[%s166 + $0x6c] sm:$0xf]
      %v203 = vld [vmem:[%s166 + $0x70] sm:$0xf]
      %v204 = vld [vmem:[%s166 + $0x74] sm:$0xf]
      %v205 = vld [vmem:[%s166 + $0x78] sm:$0xf]
      %v206 = vld [vmem:[%s166 + $0x7c] sm:$0xf]
      %v207 = vld [vmem:[%s1] sm:$0xf]
      %v208 = vld [vmem:[%s1 + $0x4] sm:$0xf]
      %v209 = vld [vmem:[%s1 + $0x8] sm:$0xf]
      %v210 = vld [vmem:[%s1 + $0xc] sm:$0xf]
      %v211 = vld [vmem:[%s1 + $0x10] sm:$0xf]
      %v212 = vld [vmem:[%s1 + $0x14] sm:$0xf]
      %v213 = vld [vmem:[%s1 + $0x18] sm:$0xf]
      %v214 = vld [vmem:[%s1 + $0x1c] sm:$0xf]
      %v215 = vld [vmem:[%s1 + $0x20] sm:$0xf]
      %v216 = vld [vmem:[%s1 + $0x24] sm:$0xf]
      %v217 = vld [vmem:[%s1 + $0x28] sm:$0x1]
      %v218 = vld [vmem:[%s2] sm:$0x1]
      %v220 = vperm.slane %v218, 0
      %v254 = vunpack.c.l.b16 %v175
      %v255 = vunpack.c.l.b16 %v176
      %v256 = vunpack.c.l.b16 %v177
      %v257 = vunpack.c.l.b16 %v178
      %v258 = vunpack.c.l.b16 %v179
      %v259 = vunpack.c.l.b16 %v180
      %v260 = vunpack.c.l.b16 %v181
      %v261 = vunpack.c.l.b16 %v182
      %v262 = vunpack.c.l.b16 %v183
      %v263 = vunpack.c.l.b16 %v184
      %v264 = vunpack.c.l.b16 %v185
      %v265 = vunpack.c.l.b16 %v186
      %v266 = vunpack.c.l.b16 %v187
      %v267 = vunpack.c.l.b16 %v188
      %v268 = vunpack.c.l.b16 %v189
      %v269 = vunpack.c.l.b16 %v190
      %v270 = vunpack.c.l.b16 %v191
      %v271 = vunpack.c.l.b16 %v192
      %v272 = vunpack.c.l.b16 %v193
      %v273 = vunpack.c.l.b16 %v194
      %v274 = vunpack.c.l.b16 %v195
      %v275 = vunpack.c.l.b16 %v196
      %v276 = vunpack.c.l.b16 %v197
      %v277 = vunpack.c.l.b16 %v198
      %v278 = vunpack.c.l.b16 %v199
      %v279 = vunpack.c.l.b16 %v200
      %v280 = vunpack.c.l.b16 %v201
      %v281 = vunpack.c.l.b16 %v202
      %v282 = vunpack.c.l.b16 %v203
      %v283 = vunpack.c.l.b16 %v204
      %v284 = vunpack.c.l.b16 %v205
      %v285 = vunpack.c.l.b16 %v206
      %v286 = vpack.c.b16 %v255, %v254
      %v287 = vpack.c.b16 %v257, %v256
      %v288 = vpack.c.b16 %v259, %v258
      %v289 = vpack.c.b16 %v261, %v260
      %v290 = vpack.c.b16 %v263, %v262
      %v291 = vpack.c.b16 %v265, %v264
      %v292 = vpack.c.b16 %v267, %v266
      %v293 = vpack.c.b16 %v269, %v268
      %v294 = vpack.c.b16 %v271, %v270
      %v295 = vpack.c.b16 %v273, %v272
      %v296 = vpack.c.b16 %v275, %v274
      %v297 = vpack.c.b16 %v277, %v276
      %v298 = vpack.c.b16 %v279, %v278
      %v299 = vpack.c.b16 %v281, %v280
      %v300 = vpack.c.b16 %v283, %v282
      %v301 = vpack.c.b16 %v285, %v284
      %v313 = vunpack.c.l.b16 %v207
      %v314 = vunpack.c.l.b16 %v208
      %v315 = vunpack.c.l.b16 %v209
      %v316 = vunpack.c.l.b16 %v210
      %v317 = vunpack.c.l.b16 %v211
      %v318 = vunpack.c.l.b16 %v212
      %v319 = vunpack.c.l.b16 %v213
      %v320 = vunpack.c.l.b16 %v214
      %v321 = vunpack.c.l.b16 %v215
      %v322 = vunpack.c.l.b16 %v216
      %v323 = vunpack.c.l.b16 %v217
      %v324 = vpack.c.b16 %v314, %v313
      %v325 = vpack.c.b16 %v316, %v315
      %v326 = vpack.c.b16 %v318, %v317
      %v327 = vpack.c.b16 %v320, %v319
      %v328 = vpack.c.b16 %v322, %v321
      %v329 = vpack.c.b16 %v323, %v323
      %vm335 = vcmask 662528
      %v337 = vsel %vm335, %v286, 0
      %v340 = vsel %vm335, %v287, 0
      %v343 = vsel %vm335, %v288, 0
      %v346 = vsel %vm335, %v289, 0
      %v349 = vsel %vm335, %v290, 0
      %v352 = vsel %vm335, %v291, 0
      %v355 = vsel %vm335, %v292, 0
      %v358 = vsel %vm335, %v293, 0
      %v361 = vsel %vm335, %v294, 0
      %v364 = vsel %vm335, %v295, 0
      %v367 = vsel %vm335, %v296, 0
      %v370 = vsel %vm335, %v297, 0
      %v373 = vsel %vm335, %v298, 0
      %v376 = vsel %vm335, %v299, 0
      %v379 = vsel %vm335, %v300, 0
      %v382 = vsel %vm335, %v301, 0
      %vm384 = vcmask 1040384
      %v385 = vsel 0, 4294967295, 65535
      %v386 = vsel %vm384, %v385, 0
      %v388 = vand.u32 %v329, %v386
      %390 = vmatpush.bf16.msra.mxu0 0
      %391 = vmatpush.bf16.msra.mxu0 0
      %392 = vmatpush.bf16.msra.mxu0 %v388
      %393 = vmatpush.bf16.msra.mxu0 %v328
      %394 = vmatpush.bf16.msra.mxu0 %v327
      %395 = vmatpush.bf16.msra.mxu0 %v326
      %396 = vmatpush.bf16.msra.mxu0 %v325
      %397 = vmatpush.bf16.msra.mxu0 %v324
      %398 = vmatmul.bf16.gmra.mxu0 %v337
      %v399 = vpop.f32.mrf.mxu0
      %v400 = vadd.f32 %v220, %v399
      %v401 = vpop.f32.mrf.mxu0
      %v402 = vadd.f32 %v220, %v401
      %403 = vmatmul.bf16.gmra.mxu0 %v340
      %v404 = vpop.f32.mrf.mxu0
      %v405 = vadd.f32 %v220, %v404
      %v406 = vpop.f32.mrf.mxu0
      %v407 = vadd.f32 %v220, %v406
      %408 = vmatmul.bf16.gmra.mxu0 %v343
      %v409 = vpop.f32.mrf.mxu0
      %v410 = vadd.f32 %v220, %v409
      %v411 = vpop.f32.mrf.mxu0
      %v412 = vadd.f32 %v220, %v411
      %413 = vmatmul.bf16.gmra.mxu0 %v346
      %v414 = vpop.f32.mrf.mxu0
      %v415 = vadd.f32 %v220, %v414
      %v416 = vpop.f32.mrf.mxu0
      %v417 = vadd.f32 %v220, %v416
      %418 = vmatmul.bf16.gmra.mxu0 %v349
      %v419 = vpop.f32.mrf.mxu0
      %v420 = vadd.f32 %v220, %v419
      %v421 = vpop.f32.mrf.mxu0
      %v422 = vadd.f32 %v220, %v421
      %423 = vmatmul.bf16.gmra.mxu0 %v352
      %v424 = vpop.f32.mrf.mxu0
      %v425 = vadd.f32 %v220, %v424
      %v426 = vpop.f32.mrf.mxu0
      %v427 = vadd.f32 %v220, %v426
      %428 = vmatmul.bf16.gmra.mxu0 %v355
      %v429 = vpop.f32.mrf.mxu0
      %v430 = vadd.f32 %v220, %v429
      %v431 = vpop.f32.mrf.mxu0
      %v432 = vadd.f32 %v220, %v431
      %433 = vmatmul.bf16.gmra.mxu0 %v358
      %v434 = vpop.f32.mrf.mxu0
      %v435 = vadd.f32 %v220, %v434
      %v436 = vpop.f32.mrf.mxu0
      %v437 = vadd.f32 %v220, %v436
      %438 = vmatmul.bf16.gmra.mxu0 %v361
      %v439 = vpop.f32.mrf.mxu0
      %v440 = vadd.f32 %v220, %v439
      %v441 = vpop.f32.mrf.mxu0
      %v442 = vadd.f32 %v220, %v441
      %443 = vmatmul.bf16.gmra.mxu0 %v364
      %v444 = vpop.f32.mrf.mxu0
      %v445 = vadd.f32 %v220, %v444
      %v446 = vpop.f32.mrf.mxu0
      %v447 = vadd.f32 %v220, %v446
      %448 = vmatmul.bf16.gmra.mxu0 %v367
      %v449 = vpop.f32.mrf.mxu0
      %v450 = vadd.f32 %v220, %v449
      %v451 = vpop.f32.mrf.mxu0
      %v452 = vadd.f32 %v220, %v451
      %453 = vmatmul.bf16.gmra.mxu0 %v370
      %v454 = vpop.f32.mrf.mxu0
      %v455 = vadd.f32 %v220, %v454
      %v456 = vpop.f32.mrf.mxu0
      %v457 = vadd.f32 %v220, %v456
      %458 = vmatmul.bf16.gmra.mxu0 %v373
      %v459 = vpop.f32.mrf.mxu0
      %v460 = vadd.f32 %v220, %v459
      %v461 = vpop.f32.mrf.mxu0
      %v462 = vadd.f32 %v220, %v461
      %463 = vmatmul.bf16.gmra.mxu0 %v376
      %v464 = vpop.f32.mrf.mxu0
      %v465 = vadd.f32 %v220, %v464
      %v466 = vpop.f32.mrf.mxu0
      %v467 = vadd.f32 %v220, %v466
      %468 = vmatmul.bf16.gmra.mxu0 %v379
      %v469 = vpop.f32.mrf.mxu0
      %v470 = vadd.f32 %v220, %v469
      %v471 = vpop.f32.mrf.mxu0
      %v472 = vadd.f32 %v220, %v471
      %473 = vmatmul.bf16.gmra.mxu0 %v382
      %v474 = vpop.f32.mrf.mxu0
      %v475 = vadd.f32 %v220, %v474
      %v476 = vpop.f32.mrf.mxu0
      %v477 = vadd.f32 %v220, %v476
      %478 = vdwg.mxu0
      %v479 = vmul.f32 %v400, 0.5
      %v480 = vmul.f32 %v402, 0.5
      %v481 = vmul.f32 %v405, 0.5
      %v482 = vmul.f32 %v407, 0.5
      %v483 = vmul.f32 %v410, 0.5
      %v484 = vmul.f32 %v412, 0.5
      %v485 = vmul.f32 %v415, 0.5
      %v486 = vmul.f32 %v417, 0.5
      %v487 = vmul.f32 %v420, 0.5
      %v488 = vmul.f32 %v422, 0.5
      %v489 = vmul.f32 %v425, 0.5
      %v490 = vmul.f32 %v427, 0.5
      %v491 = vmul.f32 %v430, 0.5
      %v492 = vmul.f32 %v432, 0.5
      %v493 = vmul.f32 %v435, 0.5
      %v494 = vmul.f32 %v437, 0.5
      %v495 = vmul.f32 %v440, 0.5
      %v496 = vmul.f32 %v442, 0.5
      %v497 = vmul.f32 %v445, 0.5
      %v498 = vmul.f32 %v447, 0.5
      %v499 = vmul.f32 %v450, 0.5
      %v500 = vmul.f32 %v452, 0.5
      %v501 = vmul.f32 %v455, 0.5
      %v502 = vmul.f32 %v457, 0.5
      %v503 = vmul.f32 %v460, 0.5
      %v504 = vmul.f32 %v462, 0.5
      %v505 = vmul.f32 %v465, 0.5
      %v506 = vmul.f32 %v467, 0.5
      %v507 = vmul.f32 %v470, 0.5
      %v508 = vmul.f32 %v472, 0.5
      %v509 = vmul.f32 %v475, 0.5
      %v510 = vmul.f32 %v477, 0.5
      %v511 = vmul.f32 %v400, 0.70710677
      %v512 = vmul.f32 %v402, 0.70710677
      %v513 = vmul.f32 %v405, 0.70710677
      %v514 = vmul.f32 %v407, 0.70710677
      %v515 = vmul.f32 %v410, 0.70710677
      %v516 = vmul.f32 %v412, 0.70710677
      %v517 = vmul.f32 %v415, 0.70710677
      %v518 = vmul.f32 %v417, 0.70710677
      %v519 = vmul.f32 %v420, 0.70710677
      %v520 = vmul.f32 %v422, 0.70710677
      %v521 = vmul.f32 %v425, 0.70710677
      %v522 = vmul.f32 %v427, 0.70710677
      %v523 = vmul.f32 %v430, 0.70710677
      %v524 = vmul.f32 %v432, 0.70710677
      %v525 = vmul.f32 %v435, 0.70710677
      %v526 = vmul.f32 %v437, 0.70710677
      %v527 = vmul.f32 %v440, 0.70710677
      %v528 = vmul.f32 %v442, 0.70710677
      %v529 = vmul.f32 %v445, 0.70710677
      %v530 = vmul.f32 %v447, 0.70710677
      %v531 = vmul.f32 %v450, 0.70710677
      %v532 = vmul.f32 %v452, 0.70710677
      %v533 = vmul.f32 %v455, 0.70710677
      %v534 = vmul.f32 %v457, 0.70710677
      %v535 = vmul.f32 %v460, 0.70710677
      %v536 = vmul.f32 %v462, 0.70710677
      %v537 = vmul.f32 %v465, 0.70710677
      %v538 = vmul.f32 %v467, 0.70710677
      %v539 = vmul.f32 %v470, 0.70710677
      %v540 = vmul.f32 %v472, 0.70710677
      %v541 = vmul.f32 %v475, 0.70710677
      %v542 = vmul.f32 %v477, 0.70710677
      %v543 = vmul.f32 %v511, %v511
      %v544 = vmin.f32 16.0, %v543
      %v545 = vmul.f32 %v544, 2.1237322e-06
      %v546 = vadd.f32 %v545, 0.00028619796
      %v547 = vmul.f32 %v544, %v546
      %v548 = vadd.f32 %v547, 0.0036580483
      %v549 = vmul.f32 %v544, %v548
      %v550 = vadd.f32 %v549, 0.05243302
      %v551 = vmul.f32 %v544, %v550
      %v552 = vadd.f32 %v551, 0.18741608
      %v553 = vmul.f32 %v544, %v552
      %v554 = vadd.f32 %v553, 1.1283791
      %v555 = vmul.f32 %v511, %v554
      %v556 = vmul.f32 %v544, 3.8918573e-05
      %v557 = vadd.f32 %v556, 0.001143296
      %v558 = vmul.f32 %v544, %v557
      %v559 = vadd.f32 %v558, 0.014752088
      %v560 = vmul.f32 %v544, %v559
      %v561 = vadd.f32 %v560, 0.112945676
      %v562 = vmul.f32 %v544, %v561
      %v563 = vadd.f32 %v562, 0.4994258
      %v564 = vmul.f32 %v544, %v563
      %v565 = vadd.f32 %v564, 1.0
      %v566 = vrcp.pop %v565
      %v567 = vmul.f32 %v565, %v566
      %v568 = vsub.f32 1.0, %v567
      %v569 = vmul.f32 %v566, %v568
      %v570 = vadd.f32 %v566, %v569
      %vm571 = vweird.f32 %v565
      %vm572 = vweird.f32 %v566
      %vm573 = vmor %vm571, %vm572
      %v574 = vsel %vm573, %v566, %v570
      %v575 = vand.u32 2147483647, %v565
      %vm576 = vcmp.eq.f32.partialorder %v575, 8.507059e+37
      %v577 = vand.u32 %v565, 2147483648
      %v578 = vor.u32 1.1754944e-38, %v577
      %v579 = vsel %vm576, %v578, %v574
      %v580 = vmul.f32 %v555, %v579
      %v581 = vmin.f32 %v580, 1.0
      %v582 = vmax.f32 %v581, -1.0
      %v583 = vmul.f32 %v512, %v512
      %v584 = vmin.f32 16.0, %v583
      %v585 = vmul.f32 %v584, 2.1237322e-06
      %v586 = vadd.f32 %v585, 0.00028619796
      %v587 = vmul.f32 %v584, %v586
      %v588 = vadd.f32 %v587, 0.0036580483
      %v589 = vmul.f32 %v584, %v588
      %v590 = vadd.f32 %v589, 0.05243302
      %v591 = vmul.f32 %v584, %v590
      %v592 = vadd.f32 %v591, 0.18741608
      %v593 = vmul.f32 %v584, %v592
      %v594 = vadd.f32 %v593, 1.1283791
      %v595 = vmul.f32 %v512, %v594
      %v596 = vmul.f32 %v584, 3.8918573e-05
      %v597 = vadd.f32 %v596, 0.001143296
      %v598 = vmul.f32 %v584, %v597
      %v599 = vadd.f32 %v598, 0.014752088
      %v600 = vmul.f32 %v584, %v599
      %v601 = vadd.f32 %v600, 0.112945676
      %v602 = vmul.f32 %v584, %v601
      %v603 = vadd.f32 %v602, 0.4994258
      %v604 = vmul.f32 %v584, %v603
      %v605 = vadd.f32 %v604, 1.0
      %v606 = vrcp.pop %v605
      %v607 = vmul.f32 %v605, %v606
      %v608 = vsub.f32 1.0, %v607
      %v609 = vmul.f32 %v606, %v608
      %v610 = vadd.f32 %v606, %v609
      %vm611 = vweird.f32 %v605
      %vm612 = vweird.f32 %v606
      %vm613 = vmor %vm611, %vm612
      %v614 = vsel %vm613, %v606, %v610
      %v615 = vand.u32 2147483647, %v605
      %vm616 = vcmp.eq.f32.partialorder %v615, 8.507059e+37
      %v617 = vand.u32 %v605, 2147483648
      %v618 = vor.u32 1.1754944e-38, %v617
      %v619 = vsel %vm616, %v618, %v614
      %v620 = vmul.f32 %v595, %v619
      %v621 = vmin.f32 %v620, 1.0
      %v622 = vmax.f32 %v621, -1.0
      %v623 = vmul.f32 %v513, %v513
      %v624 = vmin.f32 16.0, %v623
      %v625 = vmul.f32 %v624, 2.1237322e-06
      %v626 = vadd.f32 %v625, 0.00028619796
      %v627 = vmul.f32 %v624, %v626
      %v628 = vadd.f32 %v627, 0.0036580483
      %v629 = vmul.f32 %v624, %v628
      %v630 = vadd.f32 %v629, 0.05243302
      %v631 = vmul.f32 %v624, %v630
      %v632 = vadd.f32 %v631, 0.18741608
      %v633 = vmul.f32 %v624, %v632
      %v634 = vadd.f32 %v633, 1.1283791
      %v635 = vmul.f32 %v513, %v634
      %v636 = vmul.f32 %v624, 3.8918573e-05
      %v637 = vadd.f32 %v636, 0.001143296
      %v638 = vmul.f32 %v624, %v637
      %v639 = vadd.f32 %v638, 0.014752088
      %v640 = vmul.f32 %v624, %v639
      %v641 = vadd.f32 %v640, 0.112945676
      %v642 = vmul.f32 %v624, %v641
      %v643 = vadd.f32 %v642, 0.4994258
      %v644 = vmul.f32 %v624, %v643
      %v645 = vadd.f32 %v644, 1.0
      %v646 = vrcp.pop %v645
      %v647 = vmul.f32 %v645, %v646
      %v648 = vsub.f32 1.0, %v647
      %v649 = vmul.f32 %v646, %v648
      %v650 = vadd.f32 %v646, %v649
      %vm651 = vweird.f32 %v645
      %vm652 = vweird.f32 %v646
      %vm653 = vmor %vm651, %vm652
      %v654 = vsel %vm653, %v646, %v650
      %v655 = vand.u32 2147483647, %v645
      %vm656 = vcmp.eq.f32.partialorder %v655, 8.507059e+37
      %v657 = vand.u32 %v645, 2147483648
      %v658 = vor.u32 1.1754944e-38, %v657
      %v659 = vsel %vm656, %v658, %v654
      %v660 = vmul.f32 %v635, %v659
      %v661 = vmin.f32 %v660, 1.0
      %v662 = vmax.f32 %v661, -1.0
      %v663 = vmul.f32 %v514, %v514
      %v664 = vmin.f32 16.0, %v663
      %v665 = vmul.f32 %v664, 2.1237322e-06
      %v666 = vadd.f32 %v665, 0.00028619796
      %v667 = vmul.f32 %v664, %v666
      %v668 = vadd.f32 %v667, 0.0036580483
      %v669 = vmul.f32 %v664, %v668
      %v670 = vadd.f32 %v669, 0.05243302
      %v671 = vmul.f32 %v664, %v670
      %v672 = vadd.f32 %v671, 0.18741608
      %v673 = vmul.f32 %v664, %v672
      %v674 = vadd.f32 %v673, 1.1283791
      %v675 = vmul.f32 %v514, %v674
      %v676 = vmul.f32 %v664, 3.8918573e-05
      %v677 = vadd.f32 %v676, 0.001143296
      %v678 = vmul.f32 %v664, %v677
      %v679 = vadd.f32 %v678, 0.014752088
      %v680 = vmul.f32 %v664, %v679
      %v681 = vadd.f32 %v680, 0.112945676
      %v682 = vmul.f32 %v664, %v681
      %v683 = vadd.f32 %v682, 0.4994258
      %v684 = vmul.f32 %v664, %v683
      %v685 = vadd.f32 %v684, 1.0
      %v686 = vrcp.pop %v685
      %v687 = vmul.f32 %v685, %v686
      %v688 = vsub.f32 1.0, %v687
      %v689 = vmul.f32 %v686, %v688
      %v690 = vadd.f32 %v686, %v689
      %vm691 = vweird.f32 %v685
      %vm692 = vweird.f32 %v686
      %vm693 = vmor %vm691, %vm692
      %v694 = vsel %vm693, %v686, %v690
      %v695 = vand.u32 2147483647, %v685
      %vm696 = vcmp.eq.f32.partialorder %v695, 8.507059e+37
      %v697 = vand.u32 %v685, 2147483648
      %v698 = vor.u32 1.1754944e-38, %v697
      %v699 = vsel %vm696, %v698, %v694
      %v700 = vmul.f32 %v675, %v699
      %v701 = vmin.f32 %v700, 1.0
      %v702 = vmax.f32 %v701, -1.0
      %v703 = vmul.f32 %v515, %v515
      %v704 = vmin.f32 16.0, %v703
      %v705 = vmul.f32 %v704, 2.1237322e-06
      %v706 = vadd.f32 %v705, 0.00028619796
      %v707 = vmul.f32 %v704, %v706
      %v708 = vadd.f32 %v707, 0.0036580483
      %v709 = vmul.f32 %v704, %v708
      %v710 = vadd.f32 %v709, 0.05243302
      %v711 = vmul.f32 %v704, %v710
      %v712 = vadd.f32 %v711, 0.18741608
      %v713 = vmul.f32 %v704, %v712
      %v714 = vadd.f32 %v713, 1.1283791
      %v715 = vmul.f32 %v515, %v714
      %v716 = vmul.f32 %v704, 3.8918573e-05
      %v717 = vadd.f32 %v716, 0.001143296
      %v718 = vmul.f32 %v704, %v717
      %v719 = vadd.f32 %v718, 0.014752088
      %v720 = vmul.f32 %v704, %v719
      %v721 = vadd.f32 %v720, 0.112945676
      %v722 = vmul.f32 %v704, %v721
      %v723 = vadd.f32 %v722, 0.4994258
      %v724 = vmul.f32 %v704, %v723
      %v725 = vadd.f32 %v724, 1.0
      %v726 = vrcp.pop %v725
      %v727 = vmul.f32 %v725, %v726
      %v728 = vsub.f32 1.0, %v727
      %v729 = vmul.f32 %v726, %v728
      %v730 = vadd.f32 %v726, %v729
      %vm731 = vweird.f32 %v725
      %vm732 = vweird.f32 %v726
      %vm733 = vmor %vm731, %vm732
      %v734 = vsel %vm733, %v726, %v730
      %v735 = vand.u32 2147483647, %v725
      %vm736 = vcmp.eq.f32.partialorder %v735, 8.507059e+37
      %v737 = vand.u32 %v725, 2147483648
      %v738 = vor.u32 1.1754944e-38, %v737
      %v739 = vsel %vm736, %v738, %v734
      %v740 = vmul.f32 %v715, %v739
      %v741 = vmin.f32 %v740, 1.0
      %v742 = vmax.f32 %v741, -1.0
      %v743 = vmul.f32 %v516, %v516
      %v744 = vmin.f32 16.0, %v743
      %v745 = vmul.f32 %v744, 2.1237322e-06
      %v746 = vadd.f32 %v745, 0.00028619796
      %v747 = vmul.f32 %v744, %v746
      %v748 = vadd.f32 %v747, 0.0036580483
      %v749 = vmul.f32 %v744, %v748
      %v750 = vadd.f32 %v749, 0.05243302
      %v751 = vmul.f32 %v744, %v750
      %v752 = vadd.f32 %v751, 0.18741608
      %v753 = vmul.f32 %v744, %v752
      %v754 = vadd.f32 %v753, 1.1283791
      %v755 = vmul.f32 %v516, %v754
      %v756 = vmul.f32 %v744, 3.8918573e-05
      %v757 = vadd.f32 %v756, 0.001143296
      %v758 = vmul.f32 %v744, %v757
      %v759 = vadd.f32 %v758, 0.014752088
      %v760 = vmul.f32 %v744, %v759
      %v761 = vadd.f32 %v760, 0.112945676
      %v762 = vmul.f32 %v744, %v761
      %v763 = vadd.f32 %v762, 0.4994258
      %v764 = vmul.f32 %v744, %v763
      %v765 = vadd.f32 %v764, 1.0
      %v766 = vrcp.pop %v765
      %v767 = vmul.f32 %v765, %v766
      %v768 = vsub.f32 1.0, %v767
      %v769 = vmul.f32 %v766, %v768
      %v770 = vadd.f32 %v766, %v769
      %vm771 = vweird.f32 %v765
      %vm772 = vweird.f32 %v766
      %vm773 = vmor %vm771, %vm772
      %v774 = vsel %vm773, %v766, %v770
      %v775 = vand.u32 2147483647, %v765
      %vm776 = vcmp.eq.f32.partialorder %v775, 8.507059e+37
      %v777 = vand.u32 %v765, 2147483648
      %v778 = vor.u32 1.1754944e-38, %v777
      %v779 = vsel %vm776, %v778, %v774
      %v780 = vmul.f32 %v755, %v779
      %v781 = vmin.f32 %v780, 1.0
      %v782 = vmax.f32 %v781, -1.0
      %v783 = vmul.f32 %v517, %v517
      %v784 = vmin.f32 16.0, %v783
      %v785 = vmul.f32 %v784, 2.1237322e-06
      %v786 = vadd.f32 %v785, 0.00028619796
      %v787 = vmul.f32 %v784, %v786
      %v788 = vadd.f32 %v787, 0.0036580483
      %v789 = vmul.f32 %v784, %v788
      %v790 = vadd.f32 %v789, 0.05243302
      %v791 = vmul.f32 %v784, %v790
      %v792 = vadd.f32 %v791, 0.18741608
      %v793 = vmul.f32 %v784, %v792
      %v794 = vadd.f32 %v793, 1.1283791
      %v795 = vmul.f32 %v517, %v794
      %v796 = vmul.f32 %v784, 3.8918573e-05
      %v797 = vadd.f32 %v796, 0.001143296
      %v798 = vmul.f32 %v784, %v797
      %v799 = vadd.f32 %v798, 0.014752088
      %v800 = vmul.f32 %v784, %v799
      %v801 = vadd.f32 %v800, 0.112945676
      %v802 = vmul.f32 %v784, %v801
      %v803 = vadd.f32 %v802, 0.4994258
      %v804 = vmul.f32 %v784, %v803
      %v805 = vadd.f32 %v804, 1.0
      %v806 = vrcp.pop %v805
      %v807 = vmul.f32 %v805, %v806
      %v808 = vsub.f32 1.0, %v807
      %v809 = vmul.f32 %v806, %v808
      %v810 = vadd.f32 %v806, %v809
      %vm811 = vweird.f32 %v805
      %vm812 = vweird.f32 %v806
      %vm813 = vmor %vm811, %vm812
      %v814 = vsel %vm813, %v806, %v810
      %v815 = vand.u32 2147483647, %v805
      %vm816 = vcmp.eq.f32.partialorder %v815, 8.507059e+37
      %v817 = vand.u32 %v805, 2147483648
      %v818 = vor.u32 1.1754944e-38, %v817
      %v819 = vsel %vm816, %v818, %v814
      %v820 = vmul.f32 %v795, %v819
      %v821 = vmin.f32 %v820, 1.0
      %v822 = vmax.f32 %v821, -1.0
      %v823 = vmul.f32 %v518, %v518
      %v824 = vmin.f32 16.0, %v823
      %v825 = vmul.f32 %v824, 2.1237322e-06
      %v826 = vadd.f32 %v825, 0.00028619796
      %v827 = vmul.f32 %v824, %v826
      %v828 = vadd.f32 %v827, 0.0036580483
      %v829 = vmul.f32 %v824, %v828
      %v830 = vadd.f32 %v829, 0.05243302
      %v831 = vmul.f32 %v824, %v830
      %v832 = vadd.f32 %v831, 0.18741608
      %v833 = vmul.f32 %v824, %v832
      %v834 = vadd.f32 %v833, 1.1283791
      %v835 = vmul.f32 %v518, %v834
      %v836 = vmul.f32 %v824, 3.8918573e-05
      %v837 = vadd.f32 %v836, 0.001143296
      %v838 = vmul.f32 %v824, %v837
      %v839 = vadd.f32 %v838, 0.014752088
      %v840 = vmul.f32 %v824, %v839
      %v841 = vadd.f32 %v840, 0.112945676
      %v842 = vmul.f32 %v824, %v841
      %v843 = vadd.f32 %v842, 0.4994258
      %v844 = vmul.f32 %v824, %v843
      %v845 = vadd.f32 %v844, 1.0
      %v846 = vrcp.pop %v845
      %v847 = vmul.f32 %v845, %v846
      %v848 = vsub.f32 1.0, %v847
      %v849 = vmul.f32 %v846, %v848
      %v850 = vadd.f32 %v846, %v849
      %vm851 = vweird.f32 %v845
      %vm852 = vweird.f32 %v846
      %vm853 = vmor %vm851, %vm852
      %v854 = vsel %vm853, %v846, %v850
      %v855 = vand.u32 2147483647, %v845
      %vm856 = vcmp.eq.f32.partialorder %v855, 8.507059e+37
      %v857 = vand.u32 %v845, 2147483648
      %v858 = vor.u32 1.1754944e-38, %v857
      %v859 = vsel %vm856, %v858, %v854
      %v860 = vmul.f32 %v835, %v859
      %v861 = vmin.f32 %v860, 1.0
      %v862 = vmax.f32 %v861, -1.0
      %v863 = vmul.f32 %v519, %v519
      %v864 = vmin.f32 16.0, %v863
      %v865 = vmul.f32 %v864, 2.1237322e-06
      %v866 = vadd.f32 %v865, 0.00028619796
      %v867 = vmul.f32 %v864, %v866
      %v868 = vadd.f32 %v867, 0.0036580483
      %v869 = vmul.f32 %v864, %v868
      %v870 = vadd.f32 %v869, 0.05243302
      %v871 = vmul.f32 %v864, %v870
      %v872 = vadd.f32 %v871, 0.18741608
      %v873 = vmul.f32 %v864, %v872
      %v874 = vadd.f32 %v873, 1.1283791
      %v875 = vmul.f32 %v519, %v874
      %v876 = vmul.f32 %v864, 3.8918573e-05
      %v877 = vadd.f32 %v876, 0.001143296
      %v878 = vmul.f32 %v864, %v877
      %v879 = vadd.f32 %v878, 0.014752088
      %v880 = vmul.f32 %v864, %v879
      %v881 = vadd.f32 %v880, 0.112945676
      %v882 = vmul.f32 %v864, %v881
      %v883 = vadd.f32 %v882, 0.4994258
      %v884 = vmul.f32 %v864, %v883
      %v885 = vadd.f32 %v884, 1.0
      %v886 = vrcp.pop %v885
      %v887 = vmul.f32 %v885, %v886
      %v888 = vsub.f32 1.0, %v887
      %v889 = vmul.f32 %v886, %v888
      %v890 = vadd.f32 %v886, %v889
      %vm891 = vweird.f32 %v885
      %vm892 = vweird.f32 %v886
      %vm893 = vmor %vm891, %vm892
      %v894 = vsel %vm893, %v886, %v890
      %v895 = vand.u32 2147483647, %v885
      %vm896 = vcmp.eq.f32.partialorder %v895, 8.507059e+37
      %v897 = vand.u32 %v885, 2147483648
      %v898 = vor.u32 1.1754944e-38, %v897
      %v899 = vsel %vm896, %v898, %v894
      %v900 = vmul.f32 %v875, %v899
      %v901 = vmin.f32 %v900, 1.0
      %v902 = vmax.f32 %v901, -1.0
      %v903 = vmul.f32 %v520, %v520
      %v904 = vmin.f32 16.0, %v903
      %v905 = vmul.f32 %v904, 2.1237322e-06
      %v906 = vadd.f32 %v905, 0.00028619796
      %v907 = vmul.f32 %v904, %v906
      %v908 = vadd.f32 %v907, 0.0036580483
      %v909 = vmul.f32 %v904, %v908
      %v910 = vadd.f32 %v909, 0.05243302
      %v911 = vmul.f32 %v904, %v910
      %v912 = vadd.f32 %v911, 0.18741608
      %v913 = vmul.f32 %v904, %v912
      %v914 = vadd.f32 %v913, 1.1283791
      %v915 = vmul.f32 %v520, %v914
      %v916 = vmul.f32 %v904, 3.8918573e-05
      %v917 = vadd.f32 %v916, 0.001143296
      %v918 = vmul.f32 %v904, %v917
      %v919 = vadd.f32 %v918, 0.014752088
      %v920 = vmul.f32 %v904, %v919
      %v921 = vadd.f32 %v920, 0.112945676
      %v922 = vmul.f32 %v904, %v921
      %v923 = vadd.f32 %v922, 0.4994258
      %v924 = vmul.f32 %v904, %v923
      %v925 = vadd.f32 %v924, 1.0
      %v926 = vrcp.pop %v925
      %v927 = vmul.f32 %v925, %v926
      %v928 = vsub.f32 1.0, %v927
      %v929 = vmul.f32 %v926, %v928
      %v930 = vadd.f32 %v926, %v929
      %vm931 = vweird.f32 %v925
      %vm932 = vweird.f32 %v926
      %vm933 = vmor %vm931, %vm932
      %v934 = vsel %vm933, %v926, %v930
      %v935 = vand.u32 2147483647, %v925
      %vm936 = vcmp.eq.f32.partialorder %v935, 8.507059e+37
      %v937 = vand.u32 %v925, 2147483648
      %v938 = vor.u32 1.1754944e-38, %v937
      %v939 = vsel %vm936, %v938, %v934
      %v940 = vmul.f32 %v915, %v939
      %v941 = vmin.f32 %v940, 1.0
      %v942 = vmax.f32 %v941, -1.0
      %v943 = vmul.f32 %v521, %v521
      %v944 = vmin.f32 16.0, %v943
      %v945 = vmul.f32 %v944, 2.1237322e-06
      %v946 = vadd.f32 %v945, 0.00028619796
      %v947 = vmul.f32 %v944, %v946
      %v948 = vadd.f32 %v947, 0.0036580483
      %v949 = vmul.f32 %v944, %v948
      %v950 = vadd.f32 %v949, 0.05243302
      %v951 = vmul.f32 %v944, %v950
      %v952 = vadd.f32 %v951, 0.18741608
      %v953 = vmul.f32 %v944, %v952
      %v954 = vadd.f32 %v953, 1.1283791
      %v955 = vmul.f32 %v521, %v954
      %v956 = vmul.f32 %v944, 3.8918573e-05
      %v957 = vadd.f32 %v956, 0.001143296
      %v958 = vmul.f32 %v944, %v957
      %v959 = vadd.f32 %v958, 0.014752088
      %v960 = vmul.f32 %v944, %v959
      %v961 = vadd.f32 %v960, 0.112945676
      %v962 = vmul.f32 %v944, %v961
      %v963 = vadd.f32 %v962, 0.4994258
      %v964 = vmul.f32 %v944, %v963
      %v965 = vadd.f32 %v964, 1.0
      %v966 = vrcp.pop %v965
      %v967 = vmul.f32 %v965, %v966
      %v968 = vsub.f32 1.0, %v967
      %v969 = vmul.f32 %v966, %v968
      %v970 = vadd.f32 %v966, %v969
      %vm971 = vweird.f32 %v965
      %vm972 = vweird.f32 %v966
      %vm973 = vmor %vm971, %vm972
      %v974 = vsel %vm973, %v966, %v970
      %v975 = vand.u32 2147483647, %v965
      %vm976 = vcmp.eq.f32.partialorder %v975, 8.507059e+37
      %v977 = vand.u32 %v965, 2147483648
      %v978 = vor.u32 1.1754944e-38, %v977
      %v979 = vsel %vm976, %v978, %v974
      %v980 = vmul.f32 %v955, %v979
      %v981 = vmin.f32 %v980, 1.0
      %v982 = vmax.f32 %v981, -1.0
      %v983 = vmul.f32 %v522, %v522
      %v984 = vmin.f32 16.0, %v983
      %v985 = vmul.f32 %v984, 2.1237322e-06
      %v986 = vadd.f32 %v985, 0.00028619796
      %v987 = vmul.f32 %v984, %v986
      %v988 = vadd.f32 %v987, 0.0036580483
      %v989 = vmul.f32 %v984, %v988
      %v990 = vadd.f32 %v989, 0.05243302
      %v991 = vmul.f32 %v984, %v990
      %v992 = vadd.f32 %v991, 0.18741608
      %v993 = vmul.f32 %v984, %v992
      %v994 = vadd.f32 %v993, 1.1283791
      %v995 = vmul.f32 %v522, %v994
      %v996 = vmul.f32 %v984, 3.8918573e-05
      %v997 = vadd.f32 %v996, 0.001143296
      %v998 = vmul.f32 %v984, %v997
      %v999 = vadd.f32 %v998, 0.014752088
      %v1000 = vmul.f32 %v984, %v999
      %v1001 = vadd.f32 %v1000, 0.112945676
      %v1002 = vmul.f32 %v984, %v1001
      %v1003 = vadd.f32 %v1002, 0.4994258
      %v1004 = vmul.f32 %v984, %v1003
      %v1005 = vadd.f32 %v1004, 1.0
      %v1006 = vrcp.pop %v1005
      %v1007 = vmul.f32 %v1005, %v1006
      %v1008 = vsub.f32 1.0, %v1007
      %v1009 = vmul.f32 %v1006, %v1008
      %v1010 = vadd.f32 %v1006, %v1009
      %vm1011 = vweird.f32 %v1005
      %vm1012 = vweird.f32 %v1006
      %vm1013 = vmor %vm1011, %vm1012
      %v1014 = vsel %vm1013, %v1006, %v1010
      %v1015 = vand.u32 2147483647, %v1005
      %vm1016 = vcmp.eq.f32.partialorder %v1015, 8.507059e+37
      %v1017 = vand.u32 %v1005, 2147483648
      %v1018 = vor.u32 1.1754944e-38, %v1017
      %v1019 = vsel %vm1016, %v1018, %v1014
      %v1020 = vmul.f32 %v995, %v1019
      %v1021 = vmin.f32 %v1020, 1.0
      %v1022 = vmax.f32 %v1021, -1.0
      %v1023 = vmul.f32 %v523, %v523
      %v1024 = vmin.f32 16.0, %v1023
      %v1025 = vmul.f32 %v1024, 2.1237322e-06
      %v1026 = vadd.f32 %v1025, 0.00028619796
      %v1027 = vmul.f32 %v1024, %v1026
      %v1028 = vadd.f32 %v1027, 0.0036580483
      %v1029 = vmul.f32 %v1024, %v1028
      %v1030 = vadd.f32 %v1029, 0.05243302
      %v1031 = vmul.f32 %v1024, %v1030
      %v1032 = vadd.f32 %v1031, 0.18741608
      %v1033 = vmul.f32 %v1024, %v1032
      %v1034 = vadd.f32 %v1033, 1.1283791
      %v1035 = vmul.f32 %v523, %v1034
      %v1036 = vmul.f32 %v1024, 3.8918573e-05
      %v1037 = vadd.f32 %v1036, 0.001143296
      %v1038 = vmul.f32 %v1024, %v1037
      %v1039 = vadd.f32 %v1038, 0.014752088
      %v1040 = vmul.f32 %v1024, %v1039
      %v1041 = vadd.f32 %v1040, 0.112945676
      %v1042 = vmul.f32 %v1024, %v1041
      %v1043 = vadd.f32 %v1042, 0.4994258
      %v1044 = vmul.f32 %v1024, %v1043
      %v1045 = vadd.f32 %v1044, 1.0
      %v1046 = vrcp.pop %v1045
      %v1047 = vmul.f32 %v1045, %v1046
      %v1048 = vsub.f32 1.0, %v1047
      %v1049 = vmul.f32 %v1046, %v1048
      %v1050 = vadd.f32 %v1046, %v1049
      %vm1051 = vweird.f32 %v1045
      %vm1052 = vweird.f32 %v1046
      %vm1053 = vmor %vm1051, %vm1052
      %v1054 = vsel %vm1053, %v1046, %v1050
      %v1055 = vand.u32 2147483647, %v1045
      %vm1056 = vcmp.eq.f32.partialorder %v1055, 8.507059e+37
      %v1057 = vand.u32 %v1045, 2147483648
      %v1058 = vor.u32 1.1754944e-38, %v1057
      %v1059 = vsel %vm1056, %v1058, %v1054
      %v1060 = vmul.f32 %v1035, %v1059
      %v1061 = vmin.f32 %v1060, 1.0
      %v1062 = vmax.f32 %v1061, -1.0
      %v1063 = vmul.f32 %v524, %v524
      %v1064 = vmin.f32 16.0, %v1063
      %v1065 = vmul.f32 %v1064, 2.1237322e-06
      %v1066 = vadd.f32 %v1065, 0.00028619796
      %v1067 = vmul.f32 %v1064, %v1066
      %v1068 = vadd.f32 %v1067, 0.0036580483
      %v1069 = vmul.f32 %v1064, %v1068
      %v1070 = vadd.f32 %v1069, 0.05243302
      %v1071 = vmul.f32 %v1064, %v1070
      %v1072 = vadd.f32 %v1071, 0.18741608
      %v1073 = vmul.f32 %v1064, %v1072
      %v1074 = vadd.f32 %v1073, 1.1283791
      %v1075 = vmul.f32 %v524, %v1074
      %v1076 = vmul.f32 %v1064, 3.8918573e-05
      %v1077 = vadd.f32 %v1076, 0.001143296
      %v1078 = vmul.f32 %v1064, %v1077
      %v1079 = vadd.f32 %v1078, 0.014752088
      %v1080 = vmul.f32 %v1064, %v1079
      %v1081 = vadd.f32 %v1080, 0.112945676
      %v1082 = vmul.f32 %v1064, %v1081
      %v1083 = vadd.f32 %v1082, 0.4994258
      %v1084 = vmul.f32 %v1064, %v1083
      %v1085 = vadd.f32 %v1084, 1.0
      %v1086 = vrcp.pop %v1085
      %v1087 = vmul.f32 %v1085, %v1086
      %v1088 = vsub.f32 1.0, %v1087
      %v1089 = vmul.f32 %v1086, %v1088
      %v1090 = vadd.f32 %v1086, %v1089
      %vm1091 = vweird.f32 %v1085
      %vm1092 = vweird.f32 %v1086
      %vm1093 = vmor %vm1091, %vm1092
      %v1094 = vsel %vm1093, %v1086, %v1090
      %v1095 = vand.u32 2147483647, %v1085
      %vm1096 = vcmp.eq.f32.partialorder %v1095, 8.507059e+37
      %v1097 = vand.u32 %v1085, 2147483648
      %v1098 = vor.u32 1.1754944e-38, %v1097
      %v1099 = vsel %vm1096, %v1098, %v1094
      %v1100 = vmul.f32 %v1075, %v1099
      %v1101 = vmin.f32 %v1100, 1.0
      %v1102 = vmax.f32 %v1101, -1.0
      %v1103 = vmul.f32 %v525, %v525
      %v1104 = vmin.f32 16.0, %v1103
      %v1105 = vmul.f32 %v1104, 2.1237322e-06
      %v1106 = vadd.f32 %v1105, 0.00028619796
      %v1107 = vmul.f32 %v1104, %v1106
      %v1108 = vadd.f32 %v1107, 0.0036580483
      %v1109 = vmul.f32 %v1104, %v1108
      %v1110 = vadd.f32 %v1109, 0.05243302
      %v1111 = vmul.f32 %v1104, %v1110
      %v1112 = vadd.f32 %v1111, 0.18741608
      %v1113 = vmul.f32 %v1104, %v1112
      %v1114 = vadd.f32 %v1113, 1.1283791
      %v1115 = vmul.f32 %v525, %v1114
      %v1116 = vmul.f32 %v1104, 3.8918573e-05
      %v1117 = vadd.f32 %v1116, 0.001143296
      %v1118 = vmul.f32 %v1104, %v1117
      %v1119 = vadd.f32 %v1118, 0.014752088
      %v1120 = vmul.f32 %v1104, %v1119
      %v1121 = vadd.f32 %v1120, 0.112945676
      %v1122 = vmul.f32 %v1104, %v1121
      %v1123 = vadd.f32 %v1122, 0.4994258
      %v1124 = vmul.f32 %v1104, %v1123
      %v1125 = vadd.f32 %v1124, 1.0
      %v1126 = vrcp.pop %v1125
      %v1127 = vmul.f32 %v1125, %v1126
      %v1128 = vsub.f32 1.0, %v1127
      %v1129 = vmul.f32 %v1126, %v1128
      %v1130 = vadd.f32 %v1126, %v1129
      %vm1131 = vweird.f32 %v1125
      %vm1132 = vweird.f32 %v1126
      %vm1133 = vmor %vm1131, %vm1132
      %v1134 = vsel %vm1133, %v1126, %v1130
      %v1135 = vand.u32 2147483647, %v1125
      %vm1136 = vcmp.eq.f32.partialorder %v1135, 8.507059e+37
      %v1137 = vand.u32 %v1125, 2147483648
      %v1138 = vor.u32 1.1754944e-38, %v1137
      %v1139 = vsel %vm1136, %v1138, %v1134
      %v1140 = vmul.f32 %v1115, %v1139
      %v1141 = vmin.f32 %v1140, 1.0
      %v1142 = vmax.f32 %v1141, -1.0
      %v1143 = vmul.f32 %v526, %v526
      %v1144 = vmin.f32 16.0, %v1143
      %v1145 = vmul.f32 %v1144, 2.1237322e-06
      %v1146 = vadd.f32 %v1145, 0.00028619796
      %v1147 = vmul.f32 %v1144, %v1146
      %v1148 = vadd.f32 %v1147, 0.0036580483
      %v1149 = vmul.f32 %v1144, %v1148
      %v1150 = vadd.f32 %v1149, 0.05243302
      %v1151 = vmul.f32 %v1144, %v1150
      %v1152 = vadd.f32 %v1151, 0.18741608
      %v1153 = vmul.f32 %v1144, %v1152
      %v1154 = vadd.f32 %v1153, 1.1283791
      %v1155 = vmul.f32 %v526, %v1154
      %v1156 = vmul.f32 %v1144, 3.8918573e-05
      %v1157 = vadd.f32 %v1156, 0.001143296
      %v1158 = vmul.f32 %v1144, %v1157
      %v1159 = vadd.f32 %v1158, 0.014752088
      %v1160 = vmul.f32 %v1144, %v1159
      %v1161 = vadd.f32 %v1160, 0.112945676
      %v1162 = vmul.f32 %v1144, %v1161
      %v1163 = vadd.f32 %v1162, 0.4994258
      %v1164 = vmul.f32 %v1144, %v1163
      %v1165 = vadd.f32 %v1164, 1.0
      %v1166 = vrcp.pop %v1165
      %v1167 = vmul.f32 %v1165, %v1166
      %v1168 = vsub.f32 1.0, %v1167
      %v1169 = vmul.f32 %v1166, %v1168
      %v1170 = vadd.f32 %v1166, %v1169
      %vm1171 = vweird.f32 %v1165
      %vm1172 = vweird.f32 %v1166
      %vm1173 = vmor %vm1171, %vm1172
      %v1174 = vsel %vm1173, %v1166, %v1170
      %v1175 = vand.u32 2147483647, %v1165
      %vm1176 = vcmp.eq.f32.partialorder %v1175, 8.507059e+37
      %v1177 = vand.u32 %v1165, 2147483648
      %v1178 = vor.u32 1.1754944e-38, %v1177
      %v1179 = vsel %vm1176, %v1178, %v1174
      %v1180 = vmul.f32 %v1155, %v1179
      %v1181 = vmin.f32 %v1180, 1.0
      %v1182 = vmax.f32 %v1181, -1.0
      %v1183 = vmul.f32 %v527, %v527
      %v1184 = vmin.f32 16.0, %v1183
      %v1185 = vmul.f32 %v1184, 2.1237322e-06
      %v1186 = vadd.f32 %v1185, 0.00028619796
      %v1187 = vmul.f32 %v1184, %v1186
      %v1188 = vadd.f32 %v1187, 0.0036580483
      %v1189 = vmul.f32 %v1184, %v1188
      %v1190 = vadd.f32 %v1189, 0.05243302
      %v1191 = vmul.f32 %v1184, %v1190
      %v1192 = vadd.f32 %v1191, 0.18741608
      %v1193 = vmul.f32 %v1184, %v1192
      %v1194 = vadd.f32 %v1193, 1.1283791
      %v1195 = vmul.f32 %v527, %v1194
      %v1196 = vmul.f32 %v1184, 3.8918573e-05
      %v1197 = vadd.f32 %v1196, 0.001143296
      %v1198 = vmul.f32 %v1184, %v1197
      %v1199 = vadd.f32 %v1198, 0.014752088
      %v1200 = vmul.f32 %v1184, %v1199
      %v1201 = vadd.f32 %v1200, 0.112945676
      %v1202 = vmul.f32 %v1184, %v1201
      %v1203 = vadd.f32 %v1202, 0.4994258
      %v1204 = vmul.f32 %v1184, %v1203
      %v1205 = vadd.f32 %v1204, 1.0
      %v1206 = vrcp.pop %v1205
      %v1207 = vmul.f32 %v1205, %v1206
      %v1208 = vsub.f32 1.0, %v1207
      %v1209 = vmul.f32 %v1206, %v1208
      %v1210 = vadd.f32 %v1206, %v1209
      %vm1211 = vweird.f32 %v1205
      %vm1212 = vweird.f32 %v1206
      %vm1213 = vmor %vm1211, %vm1212
      %v1214 = vsel %vm1213, %v1206, %v1210
      %v1215 = vand.u32 2147483647, %v1205
      %vm1216 = vcmp.eq.f32.partialorder %v1215, 8.507059e+37
      %v1217 = vand.u32 %v1205, 2147483648
      %v1218 = vor.u32 1.1754944e-38, %v1217
      %v1219 = vsel %vm1216, %v1218, %v1214
      %v1220 = vmul.f32 %v1195, %v1219
      %v1221 = vmin.f32 %v1220, 1.0
      %v1222 = vmax.f32 %v1221, -1.0
      %v1223 = vmul.f32 %v528, %v528
      %v1224 = vmin.f32 16.0, %v1223
      %v1225 = vmul.f32 %v1224, 2.1237322e-06
      %v1226 = vadd.f32 %v1225, 0.00028619796
      %v1227 = vmul.f32 %v1224, %v1226
      %v1228 = vadd.f32 %v1227, 0.0036580483
      %v1229 = vmul.f32 %v1224, %v1228
      %v1230 = vadd.f32 %v1229, 0.05243302
      %v1231 = vmul.f32 %v1224, %v1230
      %v1232 = vadd.f32 %v1231, 0.18741608
      %v1233 = vmul.f32 %v1224, %v1232
      %v1234 = vadd.f32 %v1233, 1.1283791
      %v1235 = vmul.f32 %v528, %v1234
      %v1236 = vmul.f32 %v1224, 3.8918573e-05
      %v1237 = vadd.f32 %v1236, 0.001143296
      %v1238 = vmul.f32 %v1224, %v1237
      %v1239 = vadd.f32 %v1238, 0.014752088
      %v1240 = vmul.f32 %v1224, %v1239
      %v1241 = vadd.f32 %v1240, 0.112945676
      %v1242 = vmul.f32 %v1224, %v1241
      %v1243 = vadd.f32 %v1242, 0.4994258
      %v1244 = vmul.f32 %v1224, %v1243
      %v1245 = vadd.f32 %v1244, 1.0
      %v1246 = vrcp.pop %v1245
      %v1247 = vmul.f32 %v1245, %v1246
      %v1248 = vsub.f32 1.0, %v1247
      %v1249 = vmul.f32 %v1246, %v1248
      %v1250 = vadd.f32 %v1246, %v1249
      %vm1251 = vweird.f32 %v1245
      %vm1252 = vweird.f32 %v1246
      %vm1253 = vmor %vm1251, %vm1252
      %v1254 = vsel %vm1253, %v1246, %v1250
      %v1255 = vand.u32 2147483647, %v1245
      %vm1256 = vcmp.eq.f32.partialorder %v1255, 8.507059e+37
      %v1257 = vand.u32 %v1245, 2147483648
      %v1258 = vor.u32 1.1754944e-38, %v1257
      %v1259 = vsel %vm1256, %v1258, %v1254
      %v1260 = vmul.f32 %v1235, %v1259
      %v1261 = vmin.f32 %v1260, 1.0
      %v1262 = vmax.f32 %v1261, -1.0
      %v1263 = vmul.f32 %v529, %v529
      %v1264 = vmin.f32 16.0, %v1263
      %v1265 = vmul.f32 %v1264, 2.1237322e-06
      %v1266 = vadd.f32 %v1265, 0.00028619796
      %v1267 = vmul.f32 %v1264, %v1266
      %v1268 = vadd.f32 %v1267, 0.0036580483
      %v1269 = vmul.f32 %v1264, %v1268
      %v1270 = vadd.f32 %v1269, 0.05243302
      %v1271 = vmul.f32 %v1264, %v1270
      %v1272 = vadd.f32 %v1271, 0.18741608
      %v1273 = vmul.f32 %v1264, %v1272
      %v1274 = vadd.f32 %v1273, 1.1283791
      %v1275 = vmul.f32 %v529, %v1274
      %v1276 = vmul.f32 %v1264, 3.8918573e-05
      %v1277 = vadd.f32 %v1276, 0.001143296
      %v1278 = vmul.f32 %v1264, %v1277
      %v1279 = vadd.f32 %v1278, 0.014752088
      %v1280 = vmul.f32 %v1264, %v1279
      %v1281 = vadd.f32 %v1280, 0.112945676
      %v1282 = vmul.f32 %v1264, %v1281
      %v1283 = vadd.f32 %v1282, 0.4994258
      %v1284 = vmul.f32 %v1264, %v1283
      %v1285 = vadd.f32 %v1284, 1.0
      %v1286 = vrcp.pop %v1285
      %v1287 = vmul.f32 %v1285, %v1286
      %v1288 = vsub.f32 1.0, %v1287
      %v1289 = vmul.f32 %v1286, %v1288
      %v1290 = vadd.f32 %v1286, %v1289
      %vm1291 = vweird.f32 %v1285
      %vm1292 = vweird.f32 %v1286
      %vm1293 = vmor %vm1291, %vm1292
      %v1294 = vsel %vm1293, %v1286, %v1290
      %v1295 = vand.u32 2147483647, %v1285
      %vm1296 = vcmp.eq.f32.partialorder %v1295, 8.507059e+37
      %v1297 = vand.u32 %v1285, 2147483648
      %v1298 = vor.u32 1.1754944e-38, %v1297
      %v1299 = vsel %vm1296, %v1298, %v1294
      %v1300 = vmul.f32 %v1275, %v1299
      %v1301 = vmin.f32 %v1300, 1.0
      %v1302 = vmax.f32 %v1301, -1.0
      %v1303 = vmul.f32 %v530, %v530
      %v1304 = vmin.f32 16.0, %v1303
      %v1305 = vmul.f32 %v1304, 2.1237322e-06
      %v1306 = vadd.f32 %v1305, 0.00028619796
      %v1307 = vmul.f32 %v1304, %v1306
      %v1308 = vadd.f32 %v1307, 0.0036580483
      %v1309 = vmul.f32 %v1304, %v1308
      %v1310 = vadd.f32 %v1309, 0.05243302
      %v1311 = vmul.f32 %v1304, %v1310
      %v1312 = vadd.f32 %v1311, 0.18741608
      %v1313 = vmul.f32 %v1304, %v1312
      %v1314 = vadd.f32 %v1313, 1.1283791
      %v1315 = vmul.f32 %v530, %v1314
      %v1316 = vmul.f32 %v1304, 3.8918573e-05
      %v1317 = vadd.f32 %v1316, 0.001143296
      %v1318 = vmul.f32 %v1304, %v1317
      %v1319 = vadd.f32 %v1318, 0.014752088
      %v1320 = vmul.f32 %v1304, %v1319
      %v1321 = vadd.f32 %v1320, 0.112945676
      %v1322 = vmul.f32 %v1304, %v1321
      %v1323 = vadd.f32 %v1322, 0.4994258
      %v1324 = vmul.f32 %v1304, %v1323
      %v1325 = vadd.f32 %v1324, 1.0
      %v1326 = vrcp.pop %v1325
      %v1327 = vmul.f32 %v1325, %v1326
      %v1328 = vsub.f32 1.0, %v1327
      %v1329 = vmul.f32 %v1326, %v1328
      %v1330 = vadd.f32 %v1326, %v1329
      %vm1331 = vweird.f32 %v1325
      %vm1332 = vweird.f32 %v1326
      %vm1333 = vmor %vm1331, %vm1332
      %v1334 = vsel %vm1333, %v1326, %v1330
      %v1335 = vand.u32 2147483647, %v1325
      %vm1336 = vcmp.eq.f32.partialorder %v1335, 8.507059e+37
      %v1337 = vand.u32 %v1325, 2147483648
      %v1338 = vor.u32 1.1754944e-38, %v1337
      %v1339 = vsel %vm1336, %v1338, %v1334
      %v1340 = vmul.f32 %v1315, %v1339
      %v1341 = vmin.f32 %v1340, 1.0
      %v1342 = vmax.f32 %v1341, -1.0
      %v1343 = vmul.f32 %v531, %v531
      %v1344 = vmin.f32 16.0, %v1343
      %v1345 = vmul.f32 %v1344, 2.1237322e-06
      %v1346 = vadd.f32 %v1345, 0.00028619796
      %v1347 = vmul.f32 %v1344, %v1346
      %v1348 = vadd.f32 %v1347, 0.0036580483
      %v1349 = vmul.f32 %v1344, %v1348
      %v1350 = vadd.f32 %v1349, 0.05243302
      %v1351 = vmul.f32 %v1344, %v1350
      %v1352 = vadd.f32 %v1351, 0.18741608
      %v1353 = vmul.f32 %v1344, %v1352
      %v1354 = vadd.f32 %v1353, 1.1283791
      %v1355 = vmul.f32 %v531, %v1354
      %v1356 = vmul.f32 %v1344, 3.8918573e-05
      %v1357 = vadd.f32 %v1356, 0.001143296
      %v1358 = vmul.f32 %v1344, %v1357
      %v1359 = vadd.f32 %v1358, 0.014752088
      %v1360 = vmul.f32 %v1344, %v1359
      %v1361 = vadd.f32 %v1360, 0.112945676
      %v1362 = vmul.f32 %v1344, %v1361
      %v1363 = vadd.f32 %v1362, 0.4994258
      %v1364 = vmul.f32 %v1344, %v1363
      %v1365 = vadd.f32 %v1364, 1.0
      %v1366 = vrcp.pop %v1365
      %v1367 = vmul.f32 %v1365, %v1366
      %v1368 = vsub.f32 1.0, %v1367
      %v1369 = vmul.f32 %v1366, %v1368
      %v1370 = vadd.f32 %v1366, %v1369
      %vm1371 = vweird.f32 %v1365
      %vm1372 = vweird.f32 %v1366
      %vm1373 = vmor %vm1371, %vm1372
      %v1374 = vsel %vm1373, %v1366, %v1370
      %v1375 = vand.u32 2147483647, %v1365
      %vm1376 = vcmp.eq.f32.partialorder %v1375, 8.507059e+37
      %v1377 = vand.u32 %v1365, 2147483648
      %v1378 = vor.u32 1.1754944e-38, %v1377
      %v1379 = vsel %vm1376, %v1378, %v1374
      %v1380 = vmul.f32 %v1355, %v1379
      %v1381 = vmin.f32 %v1380, 1.0
      %v1382 = vmax.f32 %v1381, -1.0
      %v1383 = vmul.f32 %v532, %v532
      %v1384 = vmin.f32 16.0, %v1383
      %v1385 = vmul.f32 %v1384, 2.1237322e-06
      %v1386 = vadd.f32 %v1385, 0.00028619796
      %v1387 = vmul.f32 %v1384, %v1386
      %v1388 = vadd.f32 %v1387, 0.0036580483
      %v1389 = vmul.f32 %v1384, %v1388
      %v1390 = vadd.f32 %v1389, 0.05243302
      %v1391 = vmul.f32 %v1384, %v1390
      %v1392 = vadd.f32 %v1391, 0.18741608
      %v1393 = vmul.f32 %v1384, %v1392
      %v1394 = vadd.f32 %v1393, 1.1283791
      %v1395 = vmul.f32 %v532, %v1394
      %v1396 = vmul.f32 %v1384, 3.8918573e-05
      %v1397 = vadd.f32 %v1396, 0.001143296
      %v1398 = vmul.f32 %v1384, %v1397
      %v1399 = vadd.f32 %v1398, 0.014752088
      %v1400 = vmul.f32 %v1384, %v1399
      %v1401 = vadd.f32 %v1400, 0.112945676
      %v1402 = vmul.f32 %v1384, %v1401
      %v1403 = vadd.f32 %v1402, 0.4994258
      %v1404 = vmul.f32 %v1384, %v1403
      %v1405 = vadd.f32 %v1404, 1.0
      %v1406 = vrcp.pop %v1405
      %v1407 = vmul.f32 %v1405, %v1406
      %v1408 = vsub.f32 1.0, %v1407
      %v1409 = vmul.f32 %v1406, %v1408
      %v1410 = vadd.f32 %v1406, %v1409
      %vm1411 = vweird.f32 %v1405
      %vm1412 = vweird.f32 %v1406
      %vm1413 = vmor %vm1411, %vm1412
      %v1414 = vsel %vm1413, %v1406, %v1410
      %v1415 = vand.u32 2147483647, %v1405
      %vm1416 = vcmp.eq.f32.partialorder %v1415, 8.507059e+37
      %v1417 = vand.u32 %v1405, 2147483648
      %v1418 = vor.u32 1.1754944e-38, %v1417
      %v1419 = vsel %vm1416, %v1418, %v1414
      %v1420 = vmul.f32 %v1395, %v1419
      %v1421 = vmin.f32 %v1420, 1.0
      %v1422 = vmax.f32 %v1421, -1.0
      %v1423 = vmul.f32 %v533, %v533
      %v1424 = vmin.f32 16.0, %v1423
      %v1425 = vmul.f32 %v1424, 2.1237322e-06
      %v1426 = vadd.f32 %v1425, 0.00028619796
      %v1427 = vmul.f32 %v1424, %v1426
      %v1428 = vadd.f32 %v1427, 0.0036580483
      %v1429 = vmul.f32 %v1424, %v1428
      %v1430 = vadd.f32 %v1429, 0.05243302
      %v1431 = vmul.f32 %v1424, %v1430
      %v1432 = vadd.f32 %v1431, 0.18741608
      %v1433 = vmul.f32 %v1424, %v1432
      %v1434 = vadd.f32 %v1433, 1.1283791
      %v1435 = vmul.f32 %v533, %v1434
      %v1436 = vmul.f32 %v1424, 3.8918573e-05
      %v1437 = vadd.f32 %v1436, 0.001143296
      %v1438 = vmul.f32 %v1424, %v1437
      %v1439 = vadd.f32 %v1438, 0.014752088
      %v1440 = vmul.f32 %v1424, %v1439
      %v1441 = vadd.f32 %v1440, 0.112945676
      %v1442 = vmul.f32 %v1424, %v1441
      %v1443 = vadd.f32 %v1442, 0.4994258
      %v1444 = vmul.f32 %v1424, %v1443
      %v1445 = vadd.f32 %v1444, 1.0
      %v1446 = vrcp.pop %v1445
      %v1447 = vmul.f32 %v1445, %v1446
      %v1448 = vsub.f32 1.0, %v1447
      %v1449 = vmul.f32 %v1446, %v1448
      %v1450 = vadd.f32 %v1446, %v1449
      %vm1451 = vweird.f32 %v1445
      %vm1452 = vweird.f32 %v1446
      %vm1453 = vmor %vm1451, %vm1452
      %v1454 = vsel %vm1453, %v1446, %v1450
      %v1455 = vand.u32 2147483647, %v1445
      %vm1456 = vcmp.eq.f32.partialorder %v1455, 8.507059e+37
      %v1457 = vand.u32 %v1445, 2147483648
      %v1458 = vor.u32 1.1754944e-38, %v1457
      %v1459 = vsel %vm1456, %v1458, %v1454
      %v1460 = vmul.f32 %v1435, %v1459
      %v1461 = vmin.f32 %v1460, 1.0
      %v1462 = vmax.f32 %v1461, -1.0
      %v1463 = vmul.f32 %v534, %v534
      %v1464 = vmin.f32 16.0, %v1463
      %v1465 = vmul.f32 %v1464, 2.1237322e-06
      %v1466 = vadd.f32 %v1465, 0.00028619796
      %v1467 = vmul.f32 %v1464, %v1466
      %v1468 = vadd.f32 %v1467, 0.0036580483
      %v1469 = vmul.f32 %v1464, %v1468
      %v1470 = vadd.f32 %v1469, 0.05243302
      %v1471 = vmul.f32 %v1464, %v1470
      %v1472 = vadd.f32 %v1471, 0.18741608
      %v1473 = vmul.f32 %v1464, %v1472
      %v1474 = vadd.f32 %v1473, 1.1283791
      %v1475 = vmul.f32 %v534, %v1474
      %v1476 = vmul.f32 %v1464, 3.8918573e-05
      %v1477 = vadd.f32 %v1476, 0.001143296
      %v1478 = vmul.f32 %v1464, %v1477
      %v1479 = vadd.f32 %v1478, 0.014752088
      %v1480 = vmul.f32 %v1464, %v1479
      %v1481 = vadd.f32 %v1480, 0.112945676
      %v1482 = vmul.f32 %v1464, %v1481
      %v1483 = vadd.f32 %v1482, 0.4994258
      %v1484 = vmul.f32 %v1464, %v1483
      %v1485 = vadd.f32 %v1484, 1.0
      %v1486 = vrcp.pop %v1485
      %v1487 = vmul.f32 %v1485, %v1486
      %v1488 = vsub.f32 1.0, %v1487
      %v1489 = vmul.f32 %v1486, %v1488
      %v1490 = vadd.f32 %v1486, %v1489
      %vm1491 = vweird.f32 %v1485
      %vm1492 = vweird.f32 %v1486
      %vm1493 = vmor %vm1491, %vm1492
      %v1494 = vsel %vm1493, %v1486, %v1490
      %v1495 = vand.u32 2147483647, %v1485
      %vm1496 = vcmp.eq.f32.partialorder %v1495, 8.507059e+37
      %v1497 = vand.u32 %v1485, 2147483648
      %v1498 = vor.u32 1.1754944e-38, %v1497
      %v1499 = vsel %vm1496, %v1498, %v1494
      %v1500 = vmul.f32 %v1475, %v1499
      %v1501 = vmin.f32 %v1500, 1.0
      %v1502 = vmax.f32 %v1501, -1.0
      %v1503 = vmul.f32 %v535, %v535
      %v1504 = vmin.f32 16.0, %v1503
      %v1505 = vmul.f32 %v1504, 2.1237322e-06
      %v1506 = vadd.f32 %v1505, 0.00028619796
      %v1507 = vmul.f32 %v1504, %v1506
      %v1508 = vadd.f32 %v1507, 0.0036580483
      %v1509 = vmul.f32 %v1504, %v1508
      %v1510 = vadd.f32 %v1509, 0.05243302
      %v1511 = vmul.f32 %v1504, %v1510
      %v1512 = vadd.f32 %v1511, 0.18741608
      %v1513 = vmul.f32 %v1504, %v1512
      %v1514 = vadd.f32 %v1513, 1.1283791
      %v1515 = vmul.f32 %v535, %v1514
      %v1516 = vmul.f32 %v1504, 3.8918573e-05
      %v1517 = vadd.f32 %v1516, 0.001143296
      %v1518 = vmul.f32 %v1504, %v1517
      %v1519 = vadd.f32 %v1518, 0.014752088
      %v1520 = vmul.f32 %v1504, %v1519
      %v1521 = vadd.f32 %v1520, 0.112945676
      %v1522 = vmul.f32 %v1504, %v1521
      %v1523 = vadd.f32 %v1522, 0.4994258
      %v1524 = vmul.f32 %v1504, %v1523
      %v1525 = vadd.f32 %v1524, 1.0
      %v1526 = vrcp.pop %v1525
      %v1527 = vmul.f32 %v1525, %v1526
      %v1528 = vsub.f32 1.0, %v1527
      %v1529 = vmul.f32 %v1526, %v1528
      %v1530 = vadd.f32 %v1526, %v1529
      %vm1531 = vweird.f32 %v1525
      %vm1532 = vweird.f32 %v1526
      %vm1533 = vmor %vm1531, %vm1532
      %v1534 = vsel %vm1533, %v1526, %v1530
      %v1535 = vand.u32 2147483647, %v1525
      %vm1536 = vcmp.eq.f32.partialorder %v1535, 8.507059e+37
      %v1537 = vand.u32 %v1525, 2147483648
      %v1538 = vor.u32 1.1754944e-38, %v1537
      %v1539 = vsel %vm1536, %v1538, %v1534
      %v1540 = vmul.f32 %v1515, %v1539
      %v1541 = vmin.f32 %v1540, 1.0
      %v1542 = vmax.f32 %v1541, -1.0
      %v1543 = vmul.f32 %v536, %v536
      %v1544 = vmin.f32 16.0, %v1543
      %v1545 = vmul.f32 %v1544, 2.1237322e-06
      %v1546 = vadd.f32 %v1545, 0.00028619796
      %v1547 = vmul.f32 %v1544, %v1546
      %v1548 = vadd.f32 %v1547, 0.0036580483
      %v1549 = vmul.f32 %v1544, %v1548
      %v1550 = vadd.f32 %v1549, 0.05243302
      %v1551 = vmul.f32 %v1544, %v1550
      %v1552 = vadd.f32 %v1551, 0.18741608
      %v1553 = vmul.f32 %v1544, %v1552
      %v1554 = vadd.f32 %v1553, 1.1283791
      %v1555 = vmul.f32 %v536, %v1554
      %v1556 = vmul.f32 %v1544, 3.8918573e-05
      %v1557 = vadd.f32 %v1556, 0.001143296
      %v1558 = vmul.f32 %v1544, %v1557
      %v1559 = vadd.f32 %v1558, 0.014752088
      %v1560 = vmul.f32 %v1544, %v1559
      %v1561 = vadd.f32 %v1560, 0.112945676
      %v1562 = vmul.f32 %v1544, %v1561
      %v1563 = vadd.f32 %v1562, 0.4994258
      %v1564 = vmul.f32 %v1544, %v1563
      %v1565 = vadd.f32 %v1564, 1.0
      %v1566 = vrcp.pop %v1565
      %v1567 = vmul.f32 %v1565, %v1566
      %v1568 = vsub.f32 1.0, %v1567
      %v1569 = vmul.f32 %v1566, %v1568
      %v1570 = vadd.f32 %v1566, %v1569
      %vm1571 = vweird.f32 %v1565
      %vm1572 = vweird.f32 %v1566
      %vm1573 = vmor %vm1571, %vm1572
      %v1574 = vsel %vm1573, %v1566, %v1570
      %v1575 = vand.u32 2147483647, %v1565
      %vm1576 = vcmp.eq.f32.partialorder %v1575, 8.507059e+37
      %v1577 = vand.u32 %v1565, 2147483648
      %v1578 = vor.u32 1.1754944e-38, %v1577
      %v1579 = vsel %vm1576, %v1578, %v1574
      %v1580 = vmul.f32 %v1555, %v1579
      %v1581 = vmin.f32 %v1580, 1.0
      %v1582 = vmax.f32 %v1581, -1.0
      %v1583 = vmul.f32 %v537, %v537
      %v1584 = vmin.f32 16.0, %v1583
      %v1585 = vmul.f32 %v1584, 2.1237322e-06
      %v1586 = vadd.f32 %v1585, 0.00028619796
      %v1587 = vmul.f32 %v1584, %v1586
      %v1588 = vadd.f32 %v1587, 0.0036580483
      %v1589 = vmul.f32 %v1584, %v1588
      %v1590 = vadd.f32 %v1589, 0.05243302
      %v1591 = vmul.f32 %v1584, %v1590
      %v1592 = vadd.f32 %v1591, 0.18741608
      %v1593 = vmul.f32 %v1584, %v1592
      %v1594 = vadd.f32 %v1593, 1.1283791
      %v1595 = vmul.f32 %v537, %v1594
      %v1596 = vmul.f32 %v1584, 3.8918573e-05
      %v1597 = vadd.f32 %v1596, 0.001143296
      %v1598 = vmul.f32 %v1584, %v1597
      %v1599 = vadd.f32 %v1598, 0.014752088
      %v1600 = vmul.f32 %v1584, %v1599
      %v1601 = vadd.f32 %v1600, 0.112945676
      %v1602 = vmul.f32 %v1584, %v1601
      %v1603 = vadd.f32 %v1602, 0.4994258
      %v1604 = vmul.f32 %v1584, %v1603
      %v1605 = vadd.f32 %v1604, 1.0
      %v1606 = vrcp.pop %v1605
      %v1607 = vmul.f32 %v1605, %v1606
      %v1608 = vsub.f32 1.0, %v1607
      %v1609 = vmul.f32 %v1606, %v1608
      %v1610 = vadd.f32 %v1606, %v1609
      %vm1611 = vweird.f32 %v1605
      %vm1612 = vweird.f32 %v1606
      %vm1613 = vmor %vm1611, %vm1612
      %v1614 = vsel %vm1613, %v1606, %v1610
      %v1615 = vand.u32 2147483647, %v1605
      %vm1616 = vcmp.eq.f32.partialorder %v1615, 8.507059e+37
      %v1617 = vand.u32 %v1605, 2147483648
      %v1618 = vor.u32 1.1754944e-38, %v1617
      %v1619 = vsel %vm1616, %v1618, %v1614
      %v1620 = vmul.f32 %v1595, %v1619
      %v1621 = vmin.f32 %v1620, 1.0
      %v1622 = vmax.f32 %v1621, -1.0
      %v1623 = vmul.f32 %v538, %v538
      %v1624 = vmin.f32 16.0, %v1623
      %v1625 = vmul.f32 %v1624, 2.1237322e-06
      %v1626 = vadd.f32 %v1625, 0.00028619796
      %v1627 = vmul.f32 %v1624, %v1626
      %v1628 = vadd.f32 %v1627, 0.0036580483
      %v1629 = vmul.f32 %v1624, %v1628
      %v1630 = vadd.f32 %v1629, 0.05243302
      %v1631 = vmul.f32 %v1624, %v1630
      %v1632 = vadd.f32 %v1631, 0.18741608
      %v1633 = vmul.f32 %v1624, %v1632
      %v1634 = vadd.f32 %v1633, 1.1283791
      %v1635 = vmul.f32 %v538, %v1634
      %v1636 = vmul.f32 %v1624, 3.8918573e-05
      %v1637 = vadd.f32 %v1636, 0.001143296
      %v1638 = vmul.f32 %v1624, %v1637
      %v1639 = vadd.f32 %v1638, 0.014752088
      %v1640 = vmul.f32 %v1624, %v1639
      %v1641 = vadd.f32 %v1640, 0.112945676
      %v1642 = vmul.f32 %v1624, %v1641
      %v1643 = vadd.f32 %v1642, 0.4994258
      %v1644 = vmul.f32 %v1624, %v1643
      %v1645 = vadd.f32 %v1644, 1.0
      %v1646 = vrcp.pop %v1645
      %v1647 = vmul.f32 %v1645, %v1646
      %v1648 = vsub.f32 1.0, %v1647
      %v1649 = vmul.f32 %v1646, %v1648
      %v1650 = vadd.f32 %v1646, %v1649
      %vm1651 = vweird.f32 %v1645
      %vm1652 = vweird.f32 %v1646
      %vm1653 = vmor %vm1651, %vm1652
      %v1654 = vsel %vm1653, %v1646, %v1650
      %v1655 = vand.u32 2147483647, %v1645
      %vm1656 = vcmp.eq.f32.partialorder %v1655, 8.507059e+37
      %v1657 = vand.u32 %v1645, 2147483648
      %v1658 = vor.u32 1.1754944e-38, %v1657
      %v1659 = vsel %vm1656, %v1658, %v1654
      %v1660 = vmul.f32 %v1635, %v1659
      %v1661 = vmin.f32 %v1660, 1.0
      %v1662 = vmax.f32 %v1661, -1.0
      %v1663 = vmul.f32 %v539, %v539
      %v1664 = vmin.f32 16.0, %v1663
      %v1665 = vmul.f32 %v1664, 2.1237322e-06
      %v1666 = vadd.f32 %v1665, 0.00028619796
      %v1667 = vmul.f32 %v1664, %v1666
      %v1668 = vadd.f32 %v1667, 0.0036580483
      %v1669 = vmul.f32 %v1664, %v1668
      %v1670 = vadd.f32 %v1669, 0.05243302
      %v1671 = vmul.f32 %v1664, %v1670
      %v1672 = vadd.f32 %v1671, 0.18741608
      %v1673 = vmul.f32 %v1664, %v1672
      %v1674 = vadd.f32 %v1673, 1.1283791
      %v1675 = vmul.f32 %v539, %v1674
      %v1676 = vmul.f32 %v1664, 3.8918573e-05
      %v1677 = vadd.f32 %v1676, 0.001143296
      %v1678 = vmul.f32 %v1664, %v1677
      %v1679 = vadd.f32 %v1678, 0.014752088
      %v1680 = vmul.f32 %v1664, %v1679
      %v1681 = vadd.f32 %v1680, 0.112945676
      %v1682 = vmul.f32 %v1664, %v1681
      %v1683 = vadd.f32 %v1682, 0.4994258
      %v1684 = vmul.f32 %v1664, %v1683
      %v1685 = vadd.f32 %v1684, 1.0
      %v1686 = vrcp.pop %v1685
      %v1687 = vmul.f32 %v1685, %v1686
      %v1688 = vsub.f32 1.0, %v1687
      %v1689 = vmul.f32 %v1686, %v1688
      %v1690 = vadd.f32 %v1686, %v1689
      %vm1691 = vweird.f32 %v1685
      %vm1692 = vweird.f32 %v1686
      %vm1693 = vmor %vm1691, %vm1692
      %v1694 = vsel %vm1693, %v1686, %v1690
      %v1695 = vand.u32 2147483647, %v1685
      %vm1696 = vcmp.eq.f32.partialorder %v1695, 8.507059e+37
      %v1697 = vand.u32 %v1685, 2147483648
      %v1698 = vor.u32 1.1754944e-38, %v1697
      %v1699 = vsel %vm1696, %v1698, %v1694
      %v1700 = vmul.f32 %v1675, %v1699
      %v1701 = vmin.f32 %v1700, 1.0
      %v1702 = vmax.f32 %v1701, -1.0
      %v1703 = vmul.f32 %v540, %v540
      %v1704 = vmin.f32 16.0, %v1703
      %v1705 = vmul.f32 %v1704, 2.1237322e-06
      %v1706 = vadd.f32 %v1705, 0.00028619796
      %v1707 = vmul.f32 %v1704, %v1706
      %v1708 = vadd.f32 %v1707, 0.0036580483
      %v1709 = vmul.f32 %v1704, %v1708
      %v1710 = vadd.f32 %v1709, 0.05243302
      %v1711 = vmul.f32 %v1704, %v1710
      %v1712 = vadd.f32 %v1711, 0.18741608
      %v1713 = vmul.f32 %v1704, %v1712
      %v1714 = vadd.f32 %v1713, 1.1283791
      %v1715 = vmul.f32 %v540, %v1714
      %v1716 = vmul.f32 %v1704, 3.8918573e-05
      %v1717 = vadd.f32 %v1716, 0.001143296
      %v1718 = vmul.f32 %v1704, %v1717
      %v1719 = vadd.f32 %v1718, 0.014752088
      %v1720 = vmul.f32 %v1704, %v1719
      %v1721 = vadd.f32 %v1720, 0.112945676
      %v1722 = vmul.f32 %v1704, %v1721
      %v1723 = vadd.f32 %v1722, 0.4994258
      %v1724 = vmul.f32 %v1704, %v1723
      %v1725 = vadd.f32 %v1724, 1.0
      %v1726 = vrcp.pop %v1725
      %v1727 = vmul.f32 %v1725, %v1726
      %v1728 = vsub.f32 1.0, %v1727
      %v1729 = vmul.f32 %v1726, %v1728
      %v1730 = vadd.f32 %v1726, %v1729
      %vm1731 = vweird.f32 %v1725
      %vm1732 = vweird.f32 %v1726
      %vm1733 = vmor %vm1731, %vm1732
      %v1734 = vsel %vm1733, %v1726, %v1730
      %v1735 = vand.u32 2147483647, %v1725
      %vm1736 = vcmp.eq.f32.partialorder %v1735, 8.507059e+37
      %v1737 = vand.u32 %v1725, 2147483648
      %v1738 = vor.u32 1.1754944e-38, %v1737
      %v1739 = vsel %vm1736, %v1738, %v1734
      %v1740 = vmul.f32 %v1715, %v1739
      %v1741 = vmin.f32 %v1740, 1.0
      %v1742 = vmax.f32 %v1741, -1.0
      %v1743 = vmul.f32 %v541, %v541
      %v1744 = vmin.f32 16.0, %v1743
      %v1745 = vmul.f32 %v1744, 2.1237322e-06
      %v1746 = vadd.f32 %v1745, 0.00028619796
      %v1747 = vmul.f32 %v1744, %v1746
      %v1748 = vadd.f32 %v1747, 0.0036580483
      %v1749 = vmul.f32 %v1744, %v1748
      %v1750 = vadd.f32 %v1749, 0.05243302
      %v1751 = vmul.f32 %v1744, %v1750
      %v1752 = vadd.f32 %v1751, 0.18741608
      %v1753 = vmul.f32 %v1744, %v1752
      %v1754 = vadd.f32 %v1753, 1.1283791
      %v1755 = vmul.f32 %v541, %v1754
      %v1756 = vmul.f32 %v1744, 3.8918573e-05
      %v1757 = vadd.f32 %v1756, 0.001143296
      %v1758 = vmul.f32 %v1744, %v1757
      %v1759 = vadd.f32 %v1758, 0.014752088
      %v1760 = vmul.f32 %v1744, %v1759
      %v1761 = vadd.f32 %v1760, 0.112945676
      %v1762 = vmul.f32 %v1744, %v1761
      %v1763 = vadd.f32 %v1762, 0.4994258
      %v1764 = vmul.f32 %v1744, %v1763
      %v1765 = vadd.f32 %v1764, 1.0
      %v1766 = vrcp.pop %v1765
      %v1767 = vmul.f32 %v1765, %v1766
      %v1768 = vsub.f32 1.0, %v1767
      %v1769 = vmul.f32 %v1766, %v1768
      %v1770 = vadd.f32 %v1766, %v1769
      %vm1771 = vweird.f32 %v1765
      %vm1772 = vweird.f32 %v1766
      %vm1773 = vmor %vm1771, %vm1772
      %v1774 = vsel %vm1773, %v1766, %v1770
      %v1775 = vand.u32 2147483647, %v1765
      %vm1776 = vcmp.eq.f32.partialorder %v1775, 8.507059e+37
      %v1777 = vand.u32 %v1765, 2147483648
      %v1778 = vor.u32 1.1754944e-38, %v1777
      %v1779 = vsel %vm1776, %v1778, %v1774
      %v1780 = vmul.f32 %v1755, %v1779
      %v1781 = vmin.f32 %v1780, 1.0
      %v1782 = vmax.f32 %v1781, -1.0
      %v1783 = vmul.f32 %v542, %v542
      %v1784 = vmin.f32 16.0, %v1783
      %v1785 = vmul.f32 %v1784, 2.1237322e-06
      %v1786 = vadd.f32 %v1785, 0.00028619796
      %v1787 = vmul.f32 %v1784, %v1786
      %v1788 = vadd.f32 %v1787, 0.0036580483
      %v1789 = vmul.f32 %v1784, %v1788
      %v1790 = vadd.f32 %v1789, 0.05243302
      %v1791 = vmul.f32 %v1784, %v1790
      %v1792 = vadd.f32 %v1791, 0.18741608
      %v1793 = vmul.f32 %v1784, %v1792
      %v1794 = vadd.f32 %v1793, 1.1283791
      %v1795 = vmul.f32 %v542, %v1794
      %v1796 = vmul.f32 %v1784, 3.8918573e-05
      %v1797 = vadd.f32 %v1796, 0.001143296
      %v1798 = vmul.f32 %v1784, %v1797
      %v1799 = vadd.f32 %v1798, 0.014752088
      %v1800 = vmul.f32 %v1784, %v1799
      %v1801 = vadd.f32 %v1800, 0.112945676
      %v1802 = vmul.f32 %v1784, %v1801
      %v1803 = vadd.f32 %v1802, 0.4994258
      %v1804 = vmul.f32 %v1784, %v1803
      %v1805 = vadd.f32 %v1804, 1.0
      %v1806 = vrcp.pop %v1805
      %v1807 = vmul.f32 %v1805, %v1806
      %v1808 = vsub.f32 1.0, %v1807
      %v1809 = vmul.f32 %v1806, %v1808
      %v1810 = vadd.f32 %v1806, %v1809
      %vm1811 = vweird.f32 %v1805
      %vm1812 = vweird.f32 %v1806
      %vm1813 = vmor %vm1811, %vm1812
      %v1814 = vsel %vm1813, %v1806, %v1810
      %v1815 = vand.u32 2147483647, %v1805
      %vm1816 = vcmp.eq.f32.partialorder %v1815, 8.507059e+37
      %v1817 = vand.u32 %v1805, 2147483648
      %v1818 = vor.u32 1.1754944e-38, %v1817
      %v1819 = vsel %vm1816, %v1818, %v1814
      %v1820 = vmul.f32 %v1795, %v1819
      %v1821 = vmin.f32 %v1820, 1.0
      %v1822 = vmax.f32 %v1821, -1.0
      %v1823 = vadd.f32 %v582, 1.0
      %v1824 = vadd.f32 %v622, 1.0
      %v1825 = vadd.f32 %v662, 1.0
      %v1826 = vadd.f32 %v702, 1.0
      %v1827 = vadd.f32 %v742, 1.0
      %v1828 = vadd.f32 %v782, 1.0
      %v1829 = vadd.f32 %v822, 1.0
      %v1830 = vadd.f32 %v862, 1.0
      %v1831 = vadd.f32 %v902, 1.0
      %v1832 = vadd.f32 %v942, 1.0
      %v1833 = vadd.f32 %v982, 1.0
      %v1834 = vadd.f32 %v1022, 1.0
      %v1835 = vadd.f32 %v1062, 1.0
      %v1836 = vadd.f32 %v1102, 1.0
      %v1837 = vadd.f32 %v1142, 1.0
      %v1838 = vadd.f32 %v1182, 1.0
      %v1839 = vadd.f32 %v1222, 1.0
      %v1840 = vadd.f32 %v1262, 1.0
      %v1841 = vadd.f32 %v1302, 1.0
      %v1842 = vadd.f32 %v1342, 1.0
      %v1843 = vadd.f32 %v1382, 1.0
      %v1844 = vadd.f32 %v1422, 1.0
      %v1845 = vadd.f32 %v1462, 1.0
      %v1846 = vadd.f32 %v1502, 1.0
      %v1847 = vadd.f32 %v1542, 1.0
      %v1848 = vadd.f32 %v1582, 1.0
      %v1849 = vadd.f32 %v1622, 1.0
      %v1850 = vadd.f32 %v1662, 1.0
      %v1851 = vadd.f32 %v1702, 1.0
      %v1852 = vadd.f32 %v1742, 1.0
      %v1853 = vadd.f32 %v1782, 1.0
      %v1854 = vadd.f32 %v1822, 1.0
      %v1855 = vmul.f32 %v479, %v1823
      %v1856 = vmul.f32 %v480, %v1824
      %v1857 = vmul.f32 %v481, %v1825
      %v1858 = vmul.f32 %v482, %v1826
      %v1859 = vmul.f32 %v483, %v1827
      %v1860 = vmul.f32 %v484, %v1828
      %v1861 = vmul.f32 %v485, %v1829
      %v1862 = vmul.f32 %v486, %v1830
      %v1863 = vmul.f32 %v487, %v1831
      %v1864 = vmul.f32 %v488, %v1832
      %v1865 = vmul.f32 %v489, %v1833
      %v1866 = vmul.f32 %v490, %v1834
      %v1867 = vmul.f32 %v491, %v1835
      %v1868 = vmul.f32 %v492, %v1836
      %v1869 = vmul.f32 %v493, %v1837
      %v1870 = vmul.f32 %v494, %v1838
      %v1871 = vmul.f32 %v495, %v1839
      %v1872 = vmul.f32 %v496, %v1840
      %v1873 = vmul.f32 %v497, %v1841
      %v1874 = vmul.f32 %v498, %v1842
      %v1875 = vmul.f32 %v499, %v1843
      %v1876 = vmul.f32 %v500, %v1844
      %v1877 = vmul.f32 %v501, %v1845
      %v1878 = vmul.f32 %v502, %v1846
      %v1879 = vmul.f32 %v503, %v1847
      %v1880 = vmul.f32 %v504, %v1848
      %v1881 = vmul.f32 %v505, %v1849
      %v1882 = vmul.f32 %v506, %v1850
      %v1883 = vmul.f32 %v507, %v1851
      %v1884 = vmul.f32 %v508, %v1852
      %v1885 = vmul.f32 %v509, %v1853
      %v1886 = vmul.f32 %v510, %v1854
      %v1887 = vpack.c.bf16 %v1855, %v1855
      %v1888 = vpack.c.bf16 %v1856, %v1856
      %v1889 = vpack.c.bf16 %v1857, %v1857
      %v1890 = vpack.c.bf16 %v1858, %v1858
      %v1891 = vpack.c.bf16 %v1859, %v1859
      %v1892 = vpack.c.bf16 %v1860, %v1860
      %v1893 = vpack.c.bf16 %v1861, %v1861
      %v1894 = vpack.c.bf16 %v1862, %v1862
      %v1895 = vpack.c.bf16 %v1863, %v1863
      %v1896 = vpack.c.bf16 %v1864, %v1864
      %v1897 = vpack.c.bf16 %v1865, %v1865
      %v1898 = vpack.c.bf16 %v1866, %v1866
      %v1899 = vpack.c.bf16 %v1867, %v1867
      %v1900 = vpack.c.bf16 %v1868, %v1868
      %v1901 = vpack.c.bf16 %v1869, %v1869
      %v1902 = vpack.c.bf16 %v1870, %v1870
      %v1903 = vpack.c.bf16 %v1871, %v1871
      %v1904 = vpack.c.bf16 %v1872, %v1872
      %v1905 = vpack.c.bf16 %v1873, %v1873
      %v1906 = vpack.c.bf16 %v1874, %v1874
      %v1907 = vpack.c.bf16 %v1875, %v1875
      %v1908 = vpack.c.bf16 %v1876, %v1876
      %v1909 = vpack.c.bf16 %v1877, %v1877
      %v1910 = vpack.c.bf16 %v1878, %v1878
      %v1911 = vpack.c.bf16 %v1879, %v1879
      %v1912 = vpack.c.bf16 %v1880, %v1880
      %v1913 = vpack.c.bf16 %v1881, %v1881
      %v1914 = vpack.c.bf16 %v1882, %v1882
      %v1915 = vpack.c.bf16 %v1883, %v1883
      %v1916 = vpack.c.bf16 %v1884, %v1884
      %v1917 = vpack.c.bf16 %v1885, %v1885
      %v1918 = vpack.c.bf16 %v1886, %v1886
      %vm1919 = vcmask 60416
      %1920 = vst.msk [vmem:[%s172] sm:$0xf] %vm1919, %v1887
      %1921 = vst.msk [vmem:[%s172 + $0x4] sm:$0xf] %vm1919, %v1888
      %1922 = vst.msk [vmem:[%s172 + $0x8] sm:$0xf] %vm1919, %v1889
      %1923 = vst.msk [vmem:[%s172 + $0xc] sm:$0xf] %vm1919, %v1890
      %1924 = vst.msk [vmem:[%s172 + $0x10] sm:$0xf] %vm1919, %v1891
      %1925 = vst.msk [vmem:[%s172 + $0x14] sm:$0xf] %vm1919, %v1892
      %1926 = vst.msk [vmem:[%s172 + $0x18] sm:$0xf] %vm1919, %v1893
      %1927 = vst.msk [vmem:[%s172 + $0x1c] sm:$0xf] %vm1919, %v1894
      %1928 = vst.msk [vmem:[%s172 + $0x20] sm:$0xf] %vm1919, %v1895
      %1929 = vst.msk [vmem:[%s172 + $0x24] sm:$0xf] %vm1919, %v1896
      %1930 = vst.msk [vmem:[%s172 + $0x28] sm:$0xf] %vm1919, %v1897
      %1931 = vst.msk [vmem:[%s172 + $0x2c] sm:$0xf] %vm1919, %v1898
      %1932 = vst.msk [vmem:[%s172 + $0x30] sm:$0xf] %vm1919, %v1899
      %1933 = vst.msk [vmem:[%s172 + $0x34] sm:$0xf] %vm1919, %v1900
      %1934 = vst.msk [vmem:[%s172 + $0x38] sm:$0xf] %vm1919, %v1901
      %1935 = vst.msk [vmem:[%s172 + $0x3c] sm:$0xf] %vm1919, %v1902
      %1936 = vst.msk [vmem:[%s172 + $0x40] sm:$0xf] %vm1919, %v1903
      %1937 = vst.msk [vmem:[%s172 + $0x44] sm:$0xf] %vm1919, %v1904
      %1938 = vst.msk [vmem:[%s172 + $0x48] sm:$0xf] %vm1919, %v1905
      %1939 = vst.msk [vmem:[%s172 + $0x4c] sm:$0xf] %vm1919, %v1906
      %1940 = vst.msk [vmem:[%s172 + $0x50] sm:$0xf] %vm1919, %v1907
      %1941 = vst.msk [vmem:[%s172 + $0x54] sm:$0xf] %vm1919, %v1908
      %1942 = vst.msk [vmem:[%s172 + $0x58] sm:$0xf] %vm1919, %v1909
      %1943 = vst.msk [vmem:[%s172 + $0x5c] sm:$0xf] %vm1919, %v1910
      %1944 = vst.msk [vmem:[%s172 + $0x60] sm:$0xf] %vm1919, %v1911
      %1945 = vst.msk [vmem:[%s172 + $0x64] sm:$0xf] %vm1919, %v1912
      %1946 = vst.msk [vmem:[%s172 + $0x68] sm:$0xf] %vm1919, %v1913
      %1947 = vst.msk [vmem:[%s172 + $0x6c] sm:$0xf] %vm1919, %v1914
      %1948 = vst.msk [vmem:[%s172 + $0x70] sm:$0xf] %vm1919, %v1915
      %1949 = vst.msk [vmem:[%s172 + $0x74] sm:$0xf] %vm1919, %v1916
      %1950 = vst.msk [vmem:[%s172 + $0x78] sm:$0xf] %vm1919, %v1917
      %1951 = vst.msk [vmem:[%s172 + $0x7c] sm:$0xf] %vm1919, %v1918
      %s1952 = smul.u32 32, %s14
      %p1953 = scmp.lt.s32.totalorder %s1952, 63
      %s1954 = scalar_select %p1953, %s1952, 63
      %s1955 = smul.addr %s1954, 4
      %s1956 = scalar_lea.vmem %s3, %s1955
      // Predicated region
      $region33: #{head_embedding_forward.2} parent=31 // pred_check
        %p1957 = pneg %p100
      $region34: #{head_embedding_forward.2} parent=31 // pred_check_branch
        %1959 = sbr.rel (%p1957) target = $region36
      $region35: #{head_embedding_forward.2} parent=31 // pred_region
        %s1960 = smul.u32 32, %s14
      $region36: #{head_embedding_forward.2} parent=31 // pred_fallthru
        _
    $region32: #{head_embedding_forward.2} parent=5 // pred_fallthru
      _
    %p1961 = scmp.le.s32.totalorder 2, %s9
    // Predicated region
    $region37: #{head_embedding_forward.2} parent=5 // pred_check
      %p1962 = pneg %p1961
    $region38: #{head_embedding_forward.2} parent=5 // pred_check_branch
      %1964 = sbr.rel (%p1962) target = $region40
    $region39: #{head_embedding_forward.2} parent=5 // pred_region
      %s1965 = ssub.s32 %s9, 2
      // Predicated region
      $region41: #{head_embedding_forward.2} parent=39 // pred_check
        %p1966 = pneg %p106
      $region42: #{head_embedding_forward.2} parent=39 // pred_check_branch
        %1968 = sbr.rel (%p1966) target = $region44
      $region43: #{head_embedding_forward.2} parent=39 // pred_region
        %s1969 = smul.u32 32, %s15
        %p1970 = scmp.lt.s32.totalorder %s1969, 63
        %s1971 = scalar_select %p1970, %s1969, 63
        %s1972 = smul.addr %s1971, 4
        %s1973 = scalar_lea.vmem %s3, %s1972
      $region44: #{head_embedding_forward.2} parent=39 // pred_fallthru
        _
    $region40: #{head_embedding_forward.2} parent=5 // pred_fallthru
      _
  $region6: #{head_embedding_forward.2} parent=0 // loop_footer
    %s13 = sadd.s32 1, %s9
  $region7: #{head_embedding_forward.2} parent=0 // loop_footer_branch
    %8 = sbr.rel target = $region3
  $region8: #{head_embedding_forward.2} parent=0 // loop_exit
    _

// kernel: head_embedding_forward.3
$region0: #{head_embedding_forward.3}
  #allocation0 [shape = 'u32[]', space=smem, size = 0x4, offset = 0x4, fixed_abs, tag = 'smem constant byte address 0x4 - core index']
  #allocation1 [shape = 'u32[72,128]{1,0:T(1,128)}', space=vmem, size = 0x9000, scoped, tag = 'internal scratch']
  %s0 = inlined_call_operand.vmem [shape: bf16[64,216], index: 0, kind: input, shape index: {}]
  %s1 = inlined_call_operand.vmem [shape: bf16[216,16], index: 1, kind: input, shape index: {}]
  %s2 = inlined_call_operand.vmem [shape: f32[1,16], index: 2, kind: input, shape index: {}]
  %s3 = inlined_call_operand.hbm [shape: f32[64,16], index: 3, kind: output, shape index: {}]
  %s4 = sld [smem:[#allocation0]]
  $region45: #{head_embedding_forward.3} parent=0
    _
  %s6 = ssub.s32 1, %s4
  %s7 = scalar_select 0, %s6, %s4
  $region1: #{head_embedding_forward.3} parent=0
    #allocation2 [shape = 'u8[32768]{0}', space=vmem, size = 0x8000, scoped, tag = 'output window, operand 0']
    #allocation3 [shape = 's32[2]{0}', space=sflag, size = 0x8, scoped, tag = 'scoped memory for head_embedding_forward.3']
    %8 = vsyncpa [#allocation3], 0
    %s9 = scalar_lea.sflag [#allocation3], 1
    %10 = vsyncpa %s9, 0
    loop: start=0, step=1, limit=4
    $region2: #{head_embedding_forward.3} parent=1 // loop_pre_header
      _
    $region3: #{head_embedding_forward.3} parent=1 // loop_header
      %s12 = sphi 0, %s16
      %p13 = scmp.ge.s32.totalorder %s12, 4
      %s22 = sphi 0, %s24
      %s25 = sphi 0, %s22
      %s26 = sphi 0, %s25
      %s42 = sphi 0, %s26
      %s46 = sphi 0, %s46
      %s48 = sphi 0, %s46
      %s49 = sphi 0, %s48
      %s63 = sphi 0, %s49
      %s67 = sphi 0, %s67
      %s69 = sphi 0, %s67
      %s70 = sphi 0, %s69
      %s84 = sphi 0, %s70
      %s90 = sphi 0, %s92
      %s93 = sphi 0, %s90
      %s94 = sphi 0, %s93
      %s110 = sphi 0, %s94
    $region4: #{head_embedding_forward.3} parent=1 // loop_header_branch
      %15 = sbr.rel (%p13) target = $region8
    $region5: #{head_embedding_forward.3} parent=1 // loop_body
      %s17 = ssub.s32 %s12, 1
      %s18 = ssub.s32 %s12, 2
      %s19 = sadd.s32 %s12, 1
      %s20 = ssub.s32 %s12, %s19
      %p21 = scmp.eq.s32.totalorder %s20, 0
      %s23 = sadd.s32 %s22, 1
      %s24 = scalar_select %p21, %s22, %s23
      %p27 = pneg %p21
      %p28 = scmp.eq.s32.totalorder %s12, 1
      %p29 = por %p27, %p28
      %p30 = scmp.ne.s32.totalorder %s22, %s25
      %p31 = scmp.eq.s32.totalorder %s12, 0
      %p32 = por %p30, %p31
      %p33 = scmp.ne.s32.totalorder %s22, %s25
      %p34 = scmp.eq.s32.totalorder %s17, 1
      %p35 = por %p33, %p34
      %p36 = scmp.ne.s32.totalorder %s25, %s26
      %p37 = scmp.eq.s32.totalorder %s17, 0
      %p38 = por %p36, %p37
      %p39 = scmp.ne.s32.totalorder %s25, %s26
      %p40 = scmp.eq.s32.totalorder %s18, 1
      %p41 = por %p39, %p40
      %p43 = scmp.ne.s32.totalorder %s26, %s42
      %p44 = scmp.eq.s32.totalorder %s18, 0
      %p45 = por %p43, %p44
      %s47 = sadd.s32 %s46, 1
      %p50 = scmp.eq.s32.totalorder %s12, 1
      %p51 = scmp.ne.s32.totalorder %s46, %s48
      %p52 = scmp.eq.s32.totalorder %s12, 0
      %p53 = por %p51, %p52
      %p54 = scmp.ne.s32.totalorder %s46, %s48
      %p55 = scmp.eq.s32.totalorder %s17, 1
      %p56 = por %p54, %p55
      %p57 = scmp.ne.s32.totalorder %s48, %s49
      %p58 = scmp.eq.s32.totalorder %s17, 0
      %p59 = por %p57, %p58
      %p60 = scmp.ne.s32.totalorder %s48, %s49
      %p61 = scmp.eq.s32.totalorder %s18, 1
      %p62 = por %p60, %p61
      %p64 = scmp.ne.s32.totalorder %s49, %s63
      %p65 = scmp.eq.s32.totalorder %s18, 0
      %p66 = por %p64, %p65
      %s68 = sadd.s32 %s67, 1
      %p71 = scmp.eq.s32.totalorder %s12, 1
      %p72 = scmp.ne.s32.totalorder %s67, %s69
      %p73 = scmp.eq.s32.totalorder %s12, 0
      %p74 = por %p72, %p73
      %p75 = scmp.ne.s32.totalorder %s67, %s69
      %p76 = scmp.eq.s32.totalorder %s17, 1
      %p77 = por %p75, %p76
      %p78 = scmp.ne.s32.totalorder %s69, %s70
      %p79 = scmp.eq.s32.totalorder %s17, 0
      %p80 = por %p78, %p79
      %p81 = scmp.ne.s32.totalorder %s69, %s70
      %p82 = scmp.eq.s32.totalorder %s18, 1
      %p83 = por %p81, %p82
      %p85 = scmp.ne.s32.totalorder %s70, %s84
      %p86 = scmp.eq.s32.totalorder %s18, 0
      %p87 = por %p85, %p86
      %s88 = ssub.s32 %s12, %s19
      %p89 = scmp.eq.s32.totalorder %s88, 0
      %s91 = sadd.s32 %s90, 1
      %s92 = scalar_select %p89, %s90, %s91
      %p95 = pneg %p89
      %p96 = scmp.eq.s32.totalorder %s12, 1
      %p97 = por %p95, %p96
      %p98 = scmp.ne.s32.totalorder %s90, %s93
      %p99 = scmp.eq.s32.totalorder %s12, 0
      %p100 = por %p98, %p99
      %p101 = scmp.ne.s32.totalorder %s90, %s93
      %p102 = scmp.eq.s32.totalorder %s17, 1
      %p103 = por %p101, %p102
      %p104 = scmp.ne.s32.totalorder %s93, %s94
      %p105 = scmp.eq.s32.totalorder %s17, 0
      %p106 = por %p104, %p105
      %p107 = scmp.ne.s32.totalorder %s93, %s94
      %p108 = scmp.eq.s32.totalorder %s18, 1
      %p109 = por %p107, %p108
      %p111 = scmp.ne.s32.totalorder %s94, %s110
      %p112 = scmp.eq.s32.totalorder %s18, 0
      %p113 = por %p111, %p112
      %p114 = scmp.le.s32.totalorder 1, %s12
      %p115 = scmp.lt.s32.totalorder %s12, 3
      %p116 = pnand %p114, %p115
      %p117 = pneg %p116
      // Predicated region
      $region9: #{head_embedding_forward.3} parent=5 // pred_check
        _
      $region10: #{head_embedding_forward.3} parent=5 // pred_check_branch
        %119 = sbr.rel (%p116) target = $region12
      $region11: #{head_embedding_forward.3} parent=5 // pred_region
        %s120 = ssub.s32 %s12, 1
        // Predicated region
        $region13: #{head_embedding_forward.3} parent=11 // pred_check
          %p121 = pneg %p59
        $region14: #{head_embedding_forward.3} parent=11 // pred_check_branch
          %123 = sbr.rel (%p121) target = $region16
        $region15: #{head_embedding_forward.3} parent=11 // pred_region
          _
        $region16: #{head_embedding_forward.3} parent=11 // pred_fallthru
          _
        // Predicated region
        $region17: #{head_embedding_forward.3} parent=11 // pred_check
          %p124 = pneg %p80
        $region18: #{head_embedding_forward.3} parent=11 // pred_check_branch
          %126 = sbr.rel (%p124) target = $region20
        $region19: #{head_embedding_forward.3} parent=11 // pred_region
          _
        $region20: #{head_embedding_forward.3} parent=11 // pred_fallthru
          _
      $region12: #{head_embedding_forward.3} parent=5 // pred_fallthru
        _
      %p127 = scmp.lt.s32.totalorder %s12, 2
      // Predicated region
      $region21: #{head_embedding_forward.3} parent=5 // pred_check
        %p128 = pneg %p127
      $region22: #{head_embedding_forward.3} parent=5 // pred_check_branch
        %130 = sbr.rel (%p128) target = $region24
      $region23: #{head_embedding_forward.3} parent=5 // pred_region
        // Predicated region
        $region25: #{head_embedding_forward.3} parent=23 // pred_check
          %p131 = pneg %p32
        $region26: #{head_embedding_forward.3} parent=23 // pred_check_branch
          %133 = sbr.rel (%p131) target = $region28
        $region27: #{head_embedding_forward.3} parent=23 // pred_region
          %s134 = smul.u32 4, %s12
          %p135 = scmp.lt.s32.totalorder %s134, 7
          %s136 = scalar_select %p135, %s134, 7
          %s137 = smul.addr %s136, 2
          %s138 = smul.addr %s137, 4
          %s139 = scalar_lea.vmem %s0, %s138
          %s140 = smul.u32 4, %s12
        $region28: #{head_embedding_forward.3} parent=23 // pred_fallthru
          _
      $region24: #{head_embedding_forward.3} parent=5 // pred_fallthru
        _
      %p141 = scmp.le.s32.totalorder 1, %s12
      %p142 = scmp.lt.s32.totalorder %s12, 3
      %p143 = pnand %p141, %p142
      %p144 = pneg %p143
      // Predicated region
      $region29: #{head_embedding_forward.3} parent=5 // pred_check
        _
      $region30: #{head_embedding_forward.3} parent=5 // pred_check_branch
        %146 = sbr.rel (%p143) target = $region32
      $region31: #{head_embedding_forward.3} parent=5 // pred_region
        %s147 = ssub.s32 %s12, 1
        %s148 = smul.u32 4, %s17
        %p149 = scmp.lt.s32.totalorder %s148, 7
        %s150 = scalar_select %p149, %s148, 7
        %s151 = smul.addr %s150, 2
        %s152 = smul.addr %s151, 4
        %s153 = scalar_lea.vmem %s0, %s152
        %p154 = pneg %p38
        %p155 = pneg %p35
        %p156 = pneg %p59
        %p157 = pneg %p56
        %p158 = pneg %p80
        %p159 = pneg %p77
        %p160 = pneg %p106
        %p161 = pneg %p103
        %s162 = sand.u32 %s93, 1
        %s163 = scalar_lea.sflag [#allocation3], %s162
        %s164 = sand.u32 %s93, 1
        %s165 = smul.addr %s164, 32
        %s166 = scalar_lea.vmem [#allocation2], %s165
        %s167 = smul.u32 4, %s17
        %p168 = scmp.lt.s32.totalorder %s167, 7
        %s169 = scalar_select %p168, %s167, 7
        %s170 = smul.addr %s169, 2
        %s171 = smul.addr %s170, 4
        %s172 = scalar_lea.vmem %s0, %s171
        %s173 = smul.u32 4, %s17
        %s174 = smul.u32 4, %s17
        %v176 = vld [vmem:[%s172] sm:$0xff]
        %v177 = vld [vmem:[%s172 + $0x8] sm:$0xff]
        %v178 = vld [vmem:[%s172 + $0x10] sm:$0xff]
        %v179 = vld [vmem:[%s172 + $0x18] sm:$0xff]
        %v180 = vld [vmem:[%s1] sm:$0xf]
        %v181 = vld [vmem:[%s1 + $0x4] sm:$0xf]
        %v182 = vld [vmem:[%s1 + $0x8] sm:$0xf]
        %v183 = vld [vmem:[%s1 + $0xc] sm:$0xf]
        %v184 = vld [vmem:[%s1 + $0x10] sm:$0xf]
        %v185 = vld [vmem:[%s1 + $0x14] sm:$0xf]
        %v186 = vld [vmem:[%s1 + $0x18] sm:$0xf]
        %v187 = vld [vmem:[%s1 + $0x1c] sm:$0xf]
        %v188 = vld [vmem:[%s1 + $0x20] sm:$0xf]
        %v189 = vld [vmem:[%s1 + $0x24] sm:$0xf]
        %v190 = vld [vmem:[%s1 + $0x28] sm:$0xf]
        %v191 = vld [vmem:[%s1 + $0x2c] sm:$0xf]
        %v192 = vld [vmem:[%s1 + $0x30] sm:$0xf]
        %v193 = vld [vmem:[%s1 + $0x34] sm:$0xf]
        %v194 = vld [vmem:[%s1 + $0x38] sm:$0xf]
        %v195 = vld [vmem:[%s1 + $0x3c] sm:$0xf]
        %v196 = vld [vmem:[%s1 + $0x40] sm:$0xf]
        %v197 = vld [vmem:[%s1 + $0x44] sm:$0xf]
        %v198 = vld [vmem:[%s1 + $0x48] sm:$0xf]
        %v199 = vld [vmem:[%s1 + $0x4c] sm:$0xf]
        %v200 = vld [vmem:[%s1 + $0x50] sm:$0xf]
        %v201 = vld [vmem:[%s1 + $0x54] sm:$0xf]
        %v202 = vld [vmem:[%s1 + $0x58] sm:$0xf]
        %v203 = vld [vmem:[%s1 + $0x5c] sm:$0xf]
        %v204 = vld [vmem:[%s1 + $0x60] sm:$0xf]
        %v205 = vld [vmem:[%s1 + $0x64] sm:$0xf]
        %v206 = vld [vmem:[%s1 + $0x68] sm:$0xf]
        %v207 = vld [vmem:[%s2] sm:$0x1]
        %v209 = vperm.slane %v207, 0
        %v215 = vunpack.c.l.b16 %v176
        %v216 = vunpack.c.h.b16 %v176
        %v217 = vunpack.c.l.b16 %v177
        %v218 = vunpack.c.h.b16 %v177
        %v219 = vunpack.c.l.b16 %v178
        %v220 = vunpack.c.h.b16 %v178
        %v221 = vunpack.c.l.b16 %v179
        %v222 = vunpack.c.h.b16 %v179
        %v223 = vpack.c.b16 %v217, %v215
        %v224 = vpack.c.b16 %v218, %v216
        %v225 = vpack.c.b16 %v221, %v219
        %v226 = vpack.c.b16 %v222, %v220
        %v256 = vunpack.c.l.b16 %v180
        %v257 = vunpack.c.l.b16 %v181
        %v258 = vunpack.c.l.b16 %v182
        %v259 = vunpack.c.l.b16 %v183
        %v260 = vunpack.c.l.b16 %v184
        %v261 = vunpack.c.l.b16 %v185
        %v262 = vunpack.c.l.b16 %v186
        %v263 = vunpack.c.l.b16 %v187
        %v264 = vunpack.c.l.b16 %v188
        %v265 = vunpack.c.l.b16 %v189
        %v266 = vunpack.c.l.b16 %v190
        %v267 = vunpack.c.l.b16 %v191
        %v268 = vunpack.c.l.b16 %v192
        %v269 = vunpack.c.l.b16 %v193
        %v270 = vunpack.c.l.b16 %v194
        %v271 = vunpack.c.l.b16 %v195
        %v272 = vunpack.c.l.b16 %v196
        %v273 = vunpack.c.l.b16 %v197
        %v274 = vunpack.c.l.b16 %v198
        %v275 = vunpack.c.l.b16 %v199
        %v276 = vunpack.c.l.b16 %v200
        %v277 = vunpack.c.l.b16 %v201
        %v278 = vunpack.c.l.b16 %v202
        %v279 = vunpack.c.l.b16 %v203
        %v280 = vunpack.c.l.b16 %v204
        %v281 = vunpack.c.l.b16 %v205
        %v282 = vunpack.c.l.b16 %v206
        %v283 = vpack.c.b16 %v257, %v256
        %v284 = vpack.c.b16 %v259, %v258
        %v285 = vpack.c.b16 %v261, %v260
        %v286 = vpack.c.b16 %v263, %v262
        %v287 = vpack.c.b16 %v265, %v264
        %v288 = vpack.c.b16 %v267, %v266
        %v289 = vpack.c.b16 %v269, %v268
        %v290 = vpack.c.b16 %v271, %v270
        %v291 = vpack.c.b16 %v273, %v272
        %v292 = vpack.c.b16 %v275, %v274
        %v293 = vpack.c.b16 %v277, %v276
        %v294 = vpack.c.b16 %v279, %v278
        %v295 = vpack.c.b16 %v281, %v280
        %v296 = vpack.c.b16 %v282, %v282
        %vm310 = vcmask 719872
        %v312 = vsel %vm310, %v224, 0
        %v315 = vsel %vm310, %v226, 0
        %vm317 = vcmask 1043456
        %v319 = vsel %vm317, %v296, 0
        %321 = vmatpush.bf16.msra.mxu0 %v290
        %322 = vmatpush.bf16.msra.mxu0 %v289
        %323 = vmatpush.bf16.msra.mxu0 %v288
        %324 = vmatpush.bf16.msra.mxu0 %v287
        %325 = vmatpush.bf16.msra.mxu0 %v286
        %326 = vmatpush.bf16.msra.mxu0 %v285
        %327 = vmatpush.bf16.msra.mxu0 %v284
        %328 = vmatpush.bf16.msra.mxu0 %v283
        %329 = vmatmul.bf16.gmra.mxu0 %v223
        %v330 = vpop.f32.mrf.mxu0
        %v331 = vadd.f32 %v209, %v330
        %v332 = vpop.f32.mrf.mxu0
        %v333 = vadd.f32 %v209, %v332
        %334 = vmatmul.bf16.gmra.mxu0 %v225
        %v335 = vpop.f32.mrf.mxu0
        %v336 = vadd.f32 %v209, %v335
        %v337 = vpop.f32.mrf.mxu0
        %v338 = vadd.f32 %v209, %v337
        %339 = vdwg.mxu0
        %340 = vmatpush.bf16.msra.mxu0 0
        %341 = vmatpush.bf16.msra.mxu0 0
        %342 = vmatpush.bf16.msra.mxu0 %v319
        %343 = vmatpush.bf16.msra.mxu0 %v295
        %344 = vmatpush.bf16.msra.mxu0 %v294
        %345 = vmatpush.bf16.msra.mxu0 %v293
        %346 = vmatpush.bf16.msra.mxu0 %v292
        %347 = vmatpush.bf16.msra.mxu0 %v291
        %348 = vmatmul.bf16.gmra.mxu0 %v312
        %v349 = vpop.f32.mrf.mxu0
        %v350 = vadd.f32 %v331, %v349
        %v351 = vpop.f32.mrf.mxu0
        %v352 = vadd.f32 %v333, %v351
        %353 = vmatmul.bf16.gmra.mxu0 %v315
        %v354 = vpop.f32.mrf.mxu0
        %v355 = vadd.f32 %v336, %v354
        %v356 = vpop.f32.mrf.mxu0
        %v357 = vadd.f32 %v338, %v356
        %358 = vdwg.mxu0
        %vm359 = vcmask 130048
        %360 = vst.msk [vmem:[%s166] sm:$0xff] %vm359, %v350
        %361 = vst.msk [vmem:[%s166 + $0x8] sm:$0xff] %vm359, %v352
        %362 = vst.msk [vmem:[%s166 + $0x10] sm:$0xff] %vm359, %v355
        %363 = vst.msk [vmem:[%s166 + $0x18] sm:$0xff] %vm359, %v357
        %s364 = sand.u32 %s93, 1
        %s365 = scalar_lea.sflag [#allocation3], %s364
        %s366 = sand.u32 %s93, 1
        %s367 = smul.addr %s366, 32
        %s368 = scalar_lea.vmem [#allocation2], %s367
        // Predicated region
        $region33: #{head_embedding_forward.3} parent=31 // pred_check
          %p369 = pneg %p103
        $region34: #{head_embedding_forward.3} parent=31 // pred_check_branch
          %371 = sbr.rel (%p369) target = $region36
        $region35: #{head_embedding_forward.3} parent=31 // pred_region
          %s372 = smul.u32 4, %s17
          %374 = vsyncadd %s365, 0
          %s375 = smul.addr %s372, 8
          %s376 = scalar_lea.hbm %s3, %s375
          %s377 = sshll.u32 %s368, 4
          %s378 = int_to_ptr.vmem [resolvable:$true] %s377
          %s379 = sshll.u32 %s376, 4
          %s380 = int_to_ptr.hbm [resolvable:$true] %s379
          %385 = dma.vmem_to_hbm [thread:$0]  %s378, 512, %s380, %s365, 128, 128, 8
        $region36: #{head_embedding_forward.3} parent=31 // pred_fallthru
          _
      $region32: #{head_embedding_forward.3} parent=5 // pred_fallthru
        _
      %p386 = scmp.le.s32.totalorder 2, %s12
      // Predicated region
      $region37: #{head_embedding_forward.3} parent=5 // pred_check
        %p387 = pneg %p386
      $region38: #{head_embedding_forward.3} parent=5 // pred_check_branch
        %389 = sbr.rel (%p387) target = $region40
      $region39: #{head_embedding_forward.3} parent=5 // pred_region
        %s390 = ssub.s32 %s12, 2
        // Predicated region
        $region41: #{head_embedding_forward.3} parent=39 // pred_check
          %p391 = pneg %p109
        $region42: #{head_embedding_forward.3} parent=39 // pred_check_branch
          %393 = sbr.rel (%p391) target = $region44
        $region43: #{head_embedding_forward.3} parent=39 // pred_region
          %s394 = sand.u32 %s94, 1
          %s395 = scalar_lea.sflag [#allocation3], %s394
          %s396 = sand.u32 %s94, 1
          %s397 = smul.addr %s396, 32
          %s398 = scalar_lea.vmem [#allocation2], %s397
          %400 = dma.done %s395, 512
        $region44: #{head_embedding_forward.3} parent=39 // pred_fallthru
          _
      $region40: #{head_embedding_forward.3} parent=5 // pred_fallthru
        _
    $region6: #{head_embedding_forward.3} parent=1 // loop_footer
      %s16 = sadd.s32 1, %s12
    $region7: #{head_embedding_forward.3} parent=1 // loop_footer_branch
      %11 = sbr.rel target = $region3
    $region8: #{head_embedding_forward.3} parent=1 // loop_exit
      _
    %401 = vsyncpa [#allocation3], 1
    %s402 = scalar_lea.sflag [#allocation3], 1
    %403 = vsyncpa %s402, 1

</llo_original>
